<compile_context>
chip_gen: v7x
topology: tpu7x:2x2x1
jax: 0.10.0
libtpu: 0.0.40
codegen_flags: <defaults>
</compile_context>

<pallas_src>
import jax
import jax.numpy as jnp
from jax.experimental import pallas as pl
from jax.experimental.pallas import tpu as pltpu

OBS = 32          # obs_len
A = 3             # actions_n
B = 2             # batch
HID = 512         # hidden width of each branch (fixed by the module)
W1OUT = 2 * HID   # fused layer-1 width  [value | advantage]
OUT_LANES = 8     # narrow padded head width: lanes 0..A-1 adv, lane A val, rest zero


# ---------------------------- the Pallas kernel -----------------------------
def dueling_mlp_kernel(x_ref, w1_ref, b1_ref, wv2_ref, bv2_ref, wa2_ref, ba2_ref,
                       w3v_ref, w3a_ref, b3_ref, out_ref):
    f32 = jnp.float32
    bf16 = jnp.bfloat16

    # fused layer 1: h = relu([x@wv1 | x@wa1] + [bv1 | ba1])   (one MXU pass)
    x = x_ref[...].astype(bf16)                                            # (B, OBS)
    h = jnp.dot(x, w1_ref[...], preferred_element_type=f32) + b1_ref[...]
    h = jnp.maximum(h, 0.0)                                                # (B, 1024) f32

    # layer 2: per-branch dots on lane-aligned 512-wide slices (no zero-slab DMA)
    hb = h.astype(bf16)
    hv = jnp.dot(hb[:, :HID], wv2_ref[...], preferred_element_type=f32) + bv2_ref[...]
    ha = jnp.dot(hb[:, HID:], wa2_ref[...], preferred_element_type=f32) + ba2_ref[...]
    hv = jnp.maximum(hv, 0.0)                                              # (B, 512)
    ha = jnp.maximum(ha, 0.0)                                              # (B, 512)

    # layer 3: narrow heads; lanes 0..A-1 = advantage, lane A = value, rest zero
    o = (jnp.dot(hv.astype(bf16), w3v_ref[...], preferred_element_type=f32)
         + jnp.dot(ha.astype(bf16), w3a_ref[...], preferred_element_type=f32)
         + b3_ref[...])                                                    # (B, OUT_LANES)

    # dueling combine: q = val + (adv - mean(adv))
    lane = jax.lax.broadcasted_iota(jnp.int32, o.shape, 1)
    adv_mask = lane < A
    mean_adv = jnp.sum(jnp.where(adv_mask, o, 0.0), axis=-1, keepdims=True) * (1.0 / A)
    val = jnp.sum(jnp.where(lane == A, o, 0.0), axis=-1, keepdims=True)
    q = val + (o - mean_adv)
    out_ref[...] = jnp.where(adv_mask, q, 0.0)                             # (B, OUT_LANES)


# ------------------------- one-time parameter packing -----------------------
def pack_params(p):
    """Done once at parameter-load time (NOT in the per-call path)."""
    bf16, f32 = jnp.bfloat16, jnp.float32
    w1 = jnp.concatenate([p["wv1"], p["wa1"]], axis=1).astype(bf16)          # (OBS, 1024)
    b1 = jnp.concatenate([p["bv1"], p["ba1"]], axis=0)[None, :].astype(f32)  # (1, 1024)
    wv2 = p["wv2"].astype(bf16)                                              # (512, 512)
    wa2 = p["wa2"].astype(bf16)                                              # (512, 512)
    bv2 = p["bv2"][None, :].astype(f32)                                      # (1, 512)
    ba2 = p["ba2"][None, :].astype(f32)                                      # (1, 512)
    w3v = jnp.zeros((HID, OUT_LANES), f32).at[:, A].set(p["wv3"][:, 0]).astype(bf16)
    w3a = jnp.zeros((HID, OUT_LANES), f32).at[:, :A].set(p["wa3"]).astype(bf16)
    b3 = jnp.zeros((1, OUT_LANES), f32).at[0, :A].set(p["ba3"]).at[0, A].set(p["bv3"][0])
    return dict(w1=w1, b1=b1, wv2=wv2, bv2=bv2, wa2=wa2, ba2=ba2,
                w3v=w3v, w3a=w3a, b3=b3)


# ------------------------------- wrapper ------------------------------------
def simple_ff_dqn_forward(x, packed):
    args = (x.astype(jnp.float32), packed["w1"], packed["b1"], packed["wv2"],
            packed["bv2"], packed["wa2"], packed["ba2"], packed["w3v"],
            packed["w3a"], packed["b3"])

    # single invocation (no grid): whole-array blocks, everything resident in VMEM
    in_specs = [pl.BlockSpec(a.shape, lambda n=a.ndim: (0,) * n) for a in args]
    out_spec = pl.BlockSpec((B, OUT_LANES), lambda: (0, 0))

    out = pl.pallas_call(
        dueling_mlp_kernel,
        out_shape=jax.ShapeDtypeStruct((B, OUT_LANES), jnp.float32),
        in_specs=in_specs,
        out_specs=out_spec,
        compiler_params=pltpu.CompilerParams(vmem_limit_bytes=32 * 1024 * 1024),
    )(*args)
    return out[:, :A]


# ------------------------- deterministic parameters -------------------------
def init_params(key):
    ks = iter(jax.random.split(key, 16))

    def w(shape, scale=0.05):
        return scale * jax.random.normal(next(ks), shape, jnp.float32)

    return dict(
        wv1=w((OBS, HID)), bv1=w((HID,)),
        wv2=w((HID, HID)), bv2=w((HID,)),
        wv3=w((HID, 1)),   bv3=w((1,)),
        wa1=w((OBS, HID)), ba1=w((HID,)),
        wa2=w((HID, HID)), ba2=w((HID,)),
        wa3=w((HID, A)),   ba3=w((A,)),
    )


# --------------------------- pure-JAX reference -----------------------------
def reference_forward(x, p):
    x = x.astype(jnp.float32)
    hv = jnp.maximum(x @ p["wv1"] + p["bv1"], 0.0)
    hv = jnp.maximum(hv @ p["wv2"] + p["bv2"], 0.0)
    val = hv @ p["wv3"] + p["bv3"]                                        # (B, 1)
    ha = jnp.maximum(x @ p["wa1"] + p["ba1"], 0.0)
    ha = jnp.maximum(ha @ p["wa2"] + p["ba2"], 0.0)
    adv = ha @ p["wa3"] + p["ba3"]                                        # (B, A)
    return val + (adv - jnp.mean(adv, axis=1, keepdims=True))


if __name__ == "__main__":
    key = jax.random.PRNGKey(0)
    pkey, xkey = jax.random.split(key)
    params = init_params(pkey)
    packed = pack_params(params)                                          # once, not per call
    x = jax.random.normal(xkey, (B, OBS), jnp.float32)                    # (batch, obs_len)

    fwd = jax.jit(simple_ff_dqn_forward)
    out = fwd(x, packed)
    out = jax.block_until_ready(out)

    ref = reference_forward(x, params)
    assert out.shape == (B, A)
    # bf16 MXU inputs with f32 accumulation vs. f32 reference: ~1e-3-scale deltas on
    # q-values of magnitude ~0.2-0.5, so a slightly wider (still ~1%) tolerance is used.
    assert jnp.allclose(out, ref, rtol=2e-3, atol=5e-3), (out, ref)
    print("KERNEL_OK")
</pallas_src>

<mosaic_0001>
module attributes {stable_mosaic.version = 11 : i64} {
  func.func @dueling_mlp_kernel(%arg0: memref<2x32xf32, #tpu.memory_space<vmem>>, %arg1: memref<32x1024xbf16, #tpu.memory_space<vmem>>, %arg2: memref<1x1024xf32, #tpu.memory_space<vmem>>, %arg3: memref<512x512xbf16, #tpu.memory_space<vmem>>, %arg4: memref<1x512xf32, #tpu.memory_space<vmem>>, %arg5: memref<512x512xbf16, #tpu.memory_space<vmem>>, %arg6: memref<1x512xf32, #tpu.memory_space<vmem>>, %arg7: memref<512x8xbf16, #tpu.memory_space<vmem>>, %arg8: memref<512x8xbf16, #tpu.memory_space<vmem>>, %arg9: memref<1x8xf32, #tpu.memory_space<vmem>>, %arg10: memref<2x8xf32, #tpu.memory_space<vmem>>) attributes {dimension_semantics = [], scalar_prefetch = 0 : i64, scratch_operands = 0 : i64, tpu.core_type = #tpu.core_type<tc>} {
    %c0 = arith.constant 0 : index
    %c0_0 = arith.constant 0 : index
    %0 = vector.load %arg0[%c0, %c0_0] : memref<2x32xf32, #tpu.memory_space<vmem>>, vector<2x32xf32>
    %1 = arith.truncf %0 : vector<2x32xf32> to vector<2x32xbf16>
    %c0_1 = arith.constant 0 : index
    %c0_2 = arith.constant 0 : index
    %2 = vector.load %arg1[%c0_1, %c0_2] : memref<32x1024xbf16, #tpu.memory_space<vmem>>, vector<32x1024xbf16>
    %cst = arith.constant dense<0.000000e+00> : vector<2x1024xf32>
    %3 = tpu.matmul %1, %2, %cst {dimension_numbers = #tpu.dot_dimension_numbers<[1], [0], [0], [1], [0, 0, 1, 1], [], []>} : vector<2x32xbf16>, vector<32x1024xbf16>, vector<2x1024xf32> -> vector<2x1024xf32>
    %c0_3 = arith.constant 0 : index
    %c0_4 = arith.constant 0 : index
    %4 = vector.load %arg2[%c0_3, %c0_4] : memref<1x1024xf32, #tpu.memory_space<vmem>>, vector<1x1024xf32>
    %5 = vector.broadcast %4 : vector<1x1024xf32> to vector<2x1024xf32>
    %6 = arith.addf %3, %5 : vector<2x1024xf32>
    %cst_5 = arith.constant 0.000000e+00 : f32
    %7 = vector.broadcast %cst_5 : f32 to vector<2x1024xf32>
    %8 = arith.maximumf %6, %7 : vector<2x1024xf32>
    %9 = arith.truncf %8 : vector<2x1024xf32> to vector<2x1024xbf16>
    %10 = vector.extract_strided_slice %9 {offsets = [0, 0], sizes = [2, 512], strides = [1, 1]} : vector<2x1024xbf16> to vector<2x512xbf16>
    %c0_6 = arith.constant 0 : index
    %c0_7 = arith.constant 0 : index
    %11 = vector.load %arg3[%c0_6, %c0_7] : memref<512x512xbf16, #tpu.memory_space<vmem>>, vector<512x512xbf16>
    %cst_8 = arith.constant dense<0.000000e+00> : vector<2x512xf32>
    %12 = tpu.matmul %10, %11, %cst_8 {dimension_numbers = #tpu.dot_dimension_numbers<[1], [0], [0], [1], [0, 0, 1, 1], [], []>} : vector<2x512xbf16>, vector<512x512xbf16>, vector<2x512xf32> -> vector<2x512xf32>
    %c0_9 = arith.constant 0 : index
    %c0_10 = arith.constant 0 : index
    %13 = vector.load %arg4[%c0_9, %c0_10] : memref<1x512xf32, #tpu.memory_space<vmem>>, vector<1x512xf32>
    %14 = vector.broadcast %13 : vector<1x512xf32> to vector<2x512xf32>
    %15 = arith.addf %12, %14 : vector<2x512xf32>
    %16 = vector.extract_strided_slice %9 {offsets = [0, 512], sizes = [2, 512], strides = [1, 1]} : vector<2x1024xbf16> to vector<2x512xbf16>
    %c0_11 = arith.constant 0 : index
    %c0_12 = arith.constant 0 : index
    %17 = vector.load %arg5[%c0_11, %c0_12] : memref<512x512xbf16, #tpu.memory_space<vmem>>, vector<512x512xbf16>
    %cst_13 = arith.constant dense<0.000000e+00> : vector<2x512xf32>
    %18 = tpu.matmul %16, %17, %cst_13 {dimension_numbers = #tpu.dot_dimension_numbers<[1], [0], [0], [1], [0, 0, 1, 1], [], []>} : vector<2x512xbf16>, vector<512x512xbf16>, vector<2x512xf32> -> vector<2x512xf32>
    %c0_14 = arith.constant 0 : index
    %c0_15 = arith.constant 0 : index
    %19 = vector.load %arg6[%c0_14, %c0_15] : memref<1x512xf32, #tpu.memory_space<vmem>>, vector<1x512xf32>
    %20 = vector.broadcast %19 : vector<1x512xf32> to vector<2x512xf32>
    %21 = arith.addf %18, %20 : vector<2x512xf32>
    %cst_16 = arith.constant 0.000000e+00 : f32
    %22 = vector.broadcast %cst_16 : f32 to vector<2x512xf32>
    %23 = arith.maximumf %15, %22 : vector<2x512xf32>
    %cst_17 = arith.constant 0.000000e+00 : f32
    %24 = vector.broadcast %cst_17 : f32 to vector<2x512xf32>
    %25 = arith.maximumf %21, %24 : vector<2x512xf32>
    %26 = arith.truncf %23 : vector<2x512xf32> to vector<2x512xbf16>
    %c0_18 = arith.constant 0 : index
    %c0_19 = arith.constant 0 : index
    %27 = vector.load %arg7[%c0_18, %c0_19] : memref<512x8xbf16, #tpu.memory_space<vmem>>, vector<512x8xbf16>
    %cst_20 = arith.constant dense<0.000000e+00> : vector<2x8xf32>
    %28 = tpu.matmul %26, %27, %cst_20 {dimension_numbers = #tpu.dot_dimension_numbers<[1], [0], [0], [1], [0, 0, 1, 1], [], []>} : vector<2x512xbf16>, vector<512x8xbf16>, vector<2x8xf32> -> vector<2x8xf32>
    %29 = arith.truncf %25 : vector<2x512xf32> to vector<2x512xbf16>
    %c0_21 = arith.constant 0 : index
    %c0_22 = arith.constant 0 : index
    %30 = vector.load %arg8[%c0_21, %c0_22] : memref<512x8xbf16, #tpu.memory_space<vmem>>, vector<512x8xbf16>
    %cst_23 = arith.constant dense<0.000000e+00> : vector<2x8xf32>
    %31 = tpu.matmul %29, %30, %cst_23 {dimension_numbers = #tpu.dot_dimension_numbers<[1], [0], [0], [1], [0, 0, 1, 1], [], []>} : vector<2x512xbf16>, vector<512x8xbf16>, vector<2x8xf32> -> vector<2x8xf32>
    %32 = arith.addf %28, %31 : vector<2x8xf32>
    %c0_24 = arith.constant 0 : index
    %c0_25 = arith.constant 0 : index
    %33 = vector.load %arg9[%c0_24, %c0_25] : memref<1x8xf32, #tpu.memory_space<vmem>>, vector<1x8xf32>
    %34 = vector.broadcast %33 : vector<1x8xf32> to vector<2x8xf32>
    %35 = arith.addf %32, %34 : vector<2x8xf32>
    %36 = tpu.iota {dimensions = array<i32: 1>} : vector<2x8xi32>
    %c3_i32 = arith.constant 3 : i32
    %37 = vector.broadcast %c3_i32 : i32 to vector<2x8xi32>
    %38 = arith.cmpi slt, %36, %37 : vector<2x8xi32>
    %cst_26 = arith.constant 0.000000e+00 : f32
    %39 = vector.broadcast %cst_26 : f32 to vector<2x8xf32>
    %40 = arith.select %38, %35, %39 : vector<2x8xi1>, vector<2x8xf32>
    %cst_27 = arith.constant dense<0.000000e+00> : vector<2xf32>
    %41 = vector.multi_reduction <add>, %40, %cst_27 [1] : vector<2x8xf32> to vector<2xf32>
    %42 = vector.shape_cast %41 : vector<2xf32> to vector<2x1xf32>
    %cst_28 = arith.constant 0.333333343 : f32
    %43 = vector.broadcast %cst_28 : f32 to vector<2x1xf32>
    %44 = arith.mulf %42, %43 : vector<2x1xf32>
    %c3_i32_29 = arith.constant 3 : i32
    %45 = vector.broadcast %c3_i32_29 : i32 to vector<2x8xi32>
    %46 = arith.cmpi eq, %36, %45 : vector<2x8xi32>
    %cst_30 = arith.constant 0.000000e+00 : f32
    %47 = vector.broadcast %cst_30 : f32 to vector<2x8xf32>
    %48 = arith.select %46, %35, %47 : vector<2x8xi1>, vector<2x8xf32>
    %cst_31 = arith.constant dense<0.000000e+00> : vector<2xf32>
    %49 = vector.multi_reduction <add>, %48, %cst_31 [1] : vector<2x8xf32> to vector<2xf32>
    %50 = vector.shape_cast %49 : vector<2xf32> to vector<2x1xf32>
    %51 = vector.broadcast %44 : vector<2x1xf32> to vector<2x8xf32>
    %52 = arith.subf %35, %51 : vector<2x8xf32>
    %53 = vector.broadcast %50 : vector<2x1xf32> to vector<2x8xf32>
    %54 = arith.addf %53, %52 : vector<2x8xf32>
    %cst_32 = arith.constant 0.000000e+00 : f32
    %55 = vector.broadcast %cst_32 : f32 to vector<2x8xf32>
    %56 = arith.select %38, %54, %55 : vector<2x8xi1>, vector<2x8xf32>
    %c0_33 = arith.constant 0 : index
    %c0_34 = arith.constant 0 : index
    %57 = vector.load %arg10[%c0_33, %c0_34] : memref<2x8xf32, #tpu.memory_space<vmem>>, vector<2x8xf32>
    tpu.vector_store %arg10[%c0_33, %c0_34], %56 {strides = array<i32>} : memref<2x8xf32, #tpu.memory_space<vmem>>, vector<2x8xf32>,
    return
  }
}

</mosaic_0001>

<llo_original>
// kernel: simple_ff_dqn_forward.1
$region0: #{simple_ff_dqn_forward.1}
  #allocation0 [shape = 'u32[]', space=smem, size = 0x4, offset = 0x4, fixed_abs, tag = 'smem constant byte address 0x4 - core index']
  #allocation1 [shape = 'u32[144,128]{1,0:T(1,128)}', space=vmem, size = 0x12000, scoped, tag = 'internal scratch']
  %s0 = inlined_call_operand.vmem [shape: f32[2,32], index: 0, kind: input, shape index: {}]
  %s1 = inlined_call_operand.vmem [shape: bf16[32,1024], index: 1, kind: input, shape index: {}]
  %s2 = inlined_call_operand.vmem [shape: f32[1,1024], index: 2, kind: input, shape index: {}]
  %s3 = inlined_call_operand.hbm [shape: bf16[512,512], index: 3, kind: input, shape index: {}]
  %s4 = inlined_call_operand.vmem [shape: f32[1,512], index: 4, kind: input, shape index: {}]
  %s5 = inlined_call_operand.hbm [shape: bf16[512,512], index: 5, kind: input, shape index: {}]
  %s6 = inlined_call_operand.vmem [shape: f32[1,512], index: 6, kind: input, shape index: {}]
  %s7 = inlined_call_operand.vmem [shape: bf16[512,8], index: 7, kind: input, shape index: {}]
  %s8 = inlined_call_operand.vmem [shape: bf16[512,8], index: 8, kind: input, shape index: {}]
  %s9 = inlined_call_operand.vmem [shape: f32[1,8], index: 9, kind: input, shape index: {}]
  %s10 = inlined_call_operand.hbm [shape: f32[2,8], index: 10, kind: output, shape index: {}]
  %s11 = sld [smem:[#allocation0]]
  $region58: #{simple_ff_dqn_forward.1} parent=0
    _
  %s13 = ssub.s32 1, %s11
  %s14 = scalar_select 0, %s13, %s11
  $region1: #{simple_ff_dqn_forward.1} parent=0
    #allocation2 [shape = 'u8[524288]{0}', space=vmem, size = 0x80000, scoped, tag = 'input window, operand 3, single buffered']
    #allocation3 [shape = 's32[1]{0}', space=sflag, size = 0x4, scoped, tag = 'scoped memory for simple_ff_dqn_forward.1']
    #allocation4 [shape = 's32[1]{0}', space=sflag, size = 0x4, scoped, tag = 'scoped memory for simple_ff_dqn_forward.1']
    #allocation5 [shape = 'u8[524288]{0}', space=vmem, size = 0x80000, scoped, tag = 'input window, operand 5, single buffered']
    #allocation6 [shape = 's32[1]{0}', space=sflag, size = 0x4, scoped, tag = 'scoped memory for simple_ff_dqn_forward.1']
    #allocation7 [shape = 'u8[1024]{0}', space=vmem, size = 0x400, scoped, tag = 'output window, operand 0, single buffered']
    %15 = vsyncpa [#allocation3], 0
    %16 = vsyncpa [#allocation6], 0
    %17 = vsyncpa [#allocation4], 0
    // Predicated region
    $region2: #{simple_ff_dqn_forward.1} parent=1 // pred_check
      _
    $region3: #{simple_ff_dqn_forward.1} parent=1 // pred_check_branch
      %19 = sbr.rel (0) target = $region5
    $region4: #{simple_ff_dqn_forward.1} parent=1 // pred_region
      _
    $region5: #{simple_ff_dqn_forward.1} parent=1 // pred_fallthru
      _
    // Predicated region
    $region6: #{simple_ff_dqn_forward.1} parent=1 // pred_check
      _
    $region7: #{simple_ff_dqn_forward.1} parent=1 // pred_check_branch
      %21 = sbr.rel (0) target = $region9
    $region8: #{simple_ff_dqn_forward.1} parent=1 // pred_region
      _
    $region9: #{simple_ff_dqn_forward.1} parent=1 // pred_fallthru
      _
    // Predicated region
    $region10: #{simple_ff_dqn_forward.1} parent=1 // pred_check
      _
    $region11: #{simple_ff_dqn_forward.1} parent=1 // pred_check_branch
      %23 = sbr.rel (0) target = $region13
    $region12: #{simple_ff_dqn_forward.1} parent=1 // pred_region
      _
    $region13: #{simple_ff_dqn_forward.1} parent=1 // pred_fallthru
      _
    // Predicated region
    $region14: #{simple_ff_dqn_forward.1} parent=1 // pred_check
      _
    $region15: #{simple_ff_dqn_forward.1} parent=1 // pred_check_branch
      %25 = sbr.rel (0) target = $region17
    $region16: #{simple_ff_dqn_forward.1} parent=1 // pred_region
      %s27 = ssub.s32 16384, 16384
      %28 = vsyncadd [#allocation3], %s27
      %s29 = sshll.u32 [#allocation2], 4
      %s30 = int_to_ptr.vmem [resolvable:$true] %s29
      %35 = dma.hbm_to_vmem [thread:$0]  %s3, 16384, %s30, [#allocation3], 256, 256, 16
    $region17: #{simple_ff_dqn_forward.1} parent=1 // pred_fallthru
      _
    // Predicated region
    $region18: #{simple_ff_dqn_forward.1} parent=1 // pred_check
      _
    $region19: #{simple_ff_dqn_forward.1} parent=1 // pred_check_branch
      %37 = sbr.rel (0) target = $region21
    $region20: #{simple_ff_dqn_forward.1} parent=1 // pred_region
      _
    $region21: #{simple_ff_dqn_forward.1} parent=1 // pred_fallthru
      _
    // Predicated region
    $region22: #{simple_ff_dqn_forward.1} parent=1 // pred_check
      _
    $region23: #{simple_ff_dqn_forward.1} parent=1 // pred_check_branch
      %39 = sbr.rel (0) target = $region25
    $region24: #{simple_ff_dqn_forward.1} parent=1 // pred_region
      %s41 = ssub.s32 16384, 16384
      %42 = vsyncadd [#allocation6], %s41
      %s43 = sshll.u32 [#allocation5], 4
      %s44 = int_to_ptr.vmem [resolvable:$true] %s43
      %49 = dma.hbm_to_vmem [thread:$0]  %s5, 16384, %s44, [#allocation6], 256, 256, 16
    $region25: #{simple_ff_dqn_forward.1} parent=1 // pred_fallthru
      _
    // Predicated region
    $region26: #{simple_ff_dqn_forward.1} parent=1 // pred_check
      _
    $region27: #{simple_ff_dqn_forward.1} parent=1 // pred_check_branch
      %51 = sbr.rel (0) target = $region29
    $region28: #{simple_ff_dqn_forward.1} parent=1 // pred_region
      _
    $region29: #{simple_ff_dqn_forward.1} parent=1 // pred_fallthru
      _
    // Predicated region
    $region30: #{simple_ff_dqn_forward.1} parent=1 // pred_check
      _
    $region31: #{simple_ff_dqn_forward.1} parent=1 // pred_check_branch
      %53 = sbr.rel (0) target = $region33
    $region32: #{simple_ff_dqn_forward.1} parent=1 // pred_region
      _
    $region33: #{simple_ff_dqn_forward.1} parent=1 // pred_fallthru
      _
    // Predicated region
    $region34: #{simple_ff_dqn_forward.1} parent=1 // pred_check
      _
    $region35: #{simple_ff_dqn_forward.1} parent=1 // pred_check_branch
      %55 = sbr.rel (0) target = $region37
    $region36: #{simple_ff_dqn_forward.1} parent=1 // pred_region
      _
    $region37: #{simple_ff_dqn_forward.1} parent=1 // pred_fallthru
      _
    // Predicated region
    $region38: #{simple_ff_dqn_forward.1} parent=1 // pred_check
      _
    $region39: #{simple_ff_dqn_forward.1} parent=1 // pred_check_branch
      %57 = sbr.rel (0) target = $region41
    $region40: #{simple_ff_dqn_forward.1} parent=1 // pred_region
      _
    $region41: #{simple_ff_dqn_forward.1} parent=1 // pred_fallthru
      _
    // Predicated region
    $region42: #{simple_ff_dqn_forward.1} parent=1 // pred_check
      _
    $region43: #{simple_ff_dqn_forward.1} parent=1 // pred_check_branch
      %59 = sbr.rel (0) target = $region45
    $region44: #{simple_ff_dqn_forward.1} parent=1 // pred_region
      %60 = dma.done [#allocation3], 16384
    $region45: #{simple_ff_dqn_forward.1} parent=1 // pred_fallthru
      _
    // Predicated region
    $region46: #{simple_ff_dqn_forward.1} parent=1 // pred_check
      _
    $region47: #{simple_ff_dqn_forward.1} parent=1 // pred_check_branch
      %62 = sbr.rel (0) target = $region49
    $region48: #{simple_ff_dqn_forward.1} parent=1 // pred_region
      %63 = dma.done [#allocation6], 16384
    $region49: #{simple_ff_dqn_forward.1} parent=1 // pred_fallthru
      _
    %v65 = vld [vmem:[%s0] sm:$0x3]
    %v66 = vpack.c.bf16 %v65, %v65
    %v67 = vld [vmem:[%s1] sm:$0xff]
    %v68 = vld [vmem:[%s1 + $0x8] sm:$0xff]
    %v69 = vld [vmem:[%s1 + $0x10] sm:$0xff]
    %v70 = vld [vmem:[%s1 + $0x18] sm:$0xff]
    %v71 = vld [vmem:[%s1 + $0x20] sm:$0xff]
    %v72 = vld [vmem:[%s1 + $0x28] sm:$0xff]
    %v73 = vld [vmem:[%s1 + $0x30] sm:$0xff]
    %v74 = vld [vmem:[%s1 + $0x38] sm:$0xff]
    %v75 = vld [vmem:[%s1 + $0x40] sm:$0xff]
    %v76 = vld [vmem:[%s1 + $0x48] sm:$0xff]
    %v77 = vld [vmem:[%s1 + $0x50] sm:$0xff]
    %v78 = vld [vmem:[%s1 + $0x58] sm:$0xff]
    %v79 = vld [vmem:[%s1 + $0x60] sm:$0xff]
    %v80 = vld [vmem:[%s1 + $0x68] sm:$0xff]
    %v81 = vld [vmem:[%s1 + $0x70] sm:$0xff]
    %v82 = vld [vmem:[%s1 + $0x78] sm:$0xff]
    %v83 = vld [vmem:[%s2] sm:$0xff]
    %v85 = vlaneseq
    %v86 = vshrl.u32 %v85, 7
    %v87 = vsub.s32 0, %v86
    %v88 = vrot.slane %v83, %v87
    %v89 = vlaneseq
    %v90 = vshrl.u32 %v89, 7
    %v91 = vsub.s32 1, %v90
    %v92 = vrot.slane %v83, %v91
    %v93 = vlaneseq
    %v94 = vshrl.u32 %v93, 7
    %v95 = vsub.s32 2, %v94
    %v96 = vrot.slane %v83, %v95
    %v97 = vlaneseq
    %v98 = vshrl.u32 %v97, 7
    %v99 = vsub.s32 3, %v98
    %v100 = vrot.slane %v83, %v99
    %v101 = vlaneseq
    %v102 = vshrl.u32 %v101, 7
    %v103 = vsub.s32 4, %v102
    %v104 = vrot.slane %v83, %v103
    %v105 = vlaneseq
    %v106 = vshrl.u32 %v105, 7
    %v107 = vsub.s32 5, %v106
    %v108 = vrot.slane %v83, %v107
    %v109 = vlaneseq
    %v110 = vshrl.u32 %v109, 7
    %v111 = vsub.s32 6, %v110
    %v112 = vrot.slane %v83, %v111
    %v113 = vlaneseq
    %v114 = vshrl.u32 %v113, 7
    %v115 = vsub.s32 7, %v114
    %v116 = vrot.slane %v83, %v115
    %v141 = vunpack.c.l.b16 %v67
    %v142 = vunpack.c.h.b16 %v67
    %v143 = vunpack.c.l.b16 %v68
    %v144 = vunpack.c.h.b16 %v68
    %v145 = vunpack.c.l.b16 %v69
    %v146 = vunpack.c.h.b16 %v69
    %v147 = vunpack.c.l.b16 %v70
    %v148 = vunpack.c.h.b16 %v70
    %v149 = vunpack.c.l.b16 %v71
    %v150 = vunpack.c.h.b16 %v71
    %v151 = vunpack.c.l.b16 %v72
    %v152 = vunpack.c.h.b16 %v72
    %v153 = vunpack.c.l.b16 %v73
    %v154 = vunpack.c.h.b16 %v73
    %v155 = vunpack.c.l.b16 %v74
    %v156 = vunpack.c.h.b16 %v74
    %v157 = vunpack.c.l.b16 %v75
    %v158 = vunpack.c.h.b16 %v75
    %v159 = vunpack.c.l.b16 %v76
    %v160 = vunpack.c.h.b16 %v76
    %v161 = vunpack.c.l.b16 %v77
    %v162 = vunpack.c.h.b16 %v77
    %v163 = vunpack.c.l.b16 %v78
    %v164 = vunpack.c.h.b16 %v78
    %v165 = vunpack.c.l.b16 %v79
    %v166 = vunpack.c.h.b16 %v79
    %v167 = vunpack.c.l.b16 %v80
    %v168 = vunpack.c.h.b16 %v80
    %v169 = vunpack.c.l.b16 %v81
    %v170 = vunpack.c.h.b16 %v81
    %v171 = vunpack.c.l.b16 %v82
    %v172 = vunpack.c.h.b16 %v82
    %v173 = vpack.c.b16 %v149, %v141
    %v174 = vpack.c.b16 %v150, %v142
    %v175 = vpack.c.b16 %v151, %v143
    %v176 = vpack.c.b16 %v152, %v144
    %v177 = vpack.c.b16 %v153, %v145
    %v178 = vpack.c.b16 %v154, %v146
    %v179 = vpack.c.b16 %v155, %v147
    %v180 = vpack.c.b16 %v156, %v148
    %v181 = vpack.c.b16 %v165, %v157
    %v182 = vpack.c.b16 %v166, %v158
    %v183 = vpack.c.b16 %v167, %v159
    %v184 = vpack.c.b16 %v168, %v160
    %v185 = vpack.c.b16 %v169, %v161
    %v186 = vpack.c.b16 %v170, %v162
    %v187 = vpack.c.b16 %v171, %v163
    %v188 = vpack.c.b16 %v172, %v164
    %vm205 = vcmask 261120
    %v207 = vsel %vm205, %v66, 0
    %209 = vmatprep.subr.bf16.mxu0 %v174
    %210 = vmatpush1.bf16.msra.mxu0 %v173
    %211 = vmatprep.subr.bf16.mxu0 %v182
    %212 = vmatpush1.bf16.msra.mxu0 %v181
    %213 = vmatprep.subr.bf16.mxu0 0
    %214 = vmatpush1.bf16.msra.mxu0 0
    %215 = vmatprep.subr.bf16.mxu0 0
    %216 = vmatpush1.bf16.msra.mxu0 0
    %217 = vmatprep.subr.bf16.mxu0 0
    %218 = vmatpush1.bf16.msra.mxu0 0
    %219 = vmatprep.subr.bf16.mxu0 0
    %220 = vmatpush1.bf16.msra.mxu0 0
    %221 = vmatprep.subr.bf16.mxu0 0
    %222 = vmatpush1.bf16.msra.mxu0 0
    %223 = vmatprep.subr.bf16.mxu0 0
    %224 = vmatpush1.bf16.msra.mxu0 0
    %225 = vmatprep.subr.bf16.mxu0 0
    %226 = vmatpush1.bf16.msra.mxu0 0
    %227 = vmatprep.subr.bf16.mxu0 0
    %228 = vmatpush1.bf16.msra.mxu0 0
    %229 = vmatprep.subr.bf16.mxu0 0
    %230 = vmatpush1.bf16.msra.mxu0 0
    %231 = vmatprep.subr.bf16.mxu0 0
    %232 = vmatpush1.bf16.msra.mxu0 0
    %233 = vmatprep.subr.bf16.mxu0 0
    %234 = vmatpush1.bf16.msra.mxu0 0
    %235 = vmatprep.subr.bf16.mxu0 0
    %236 = vmatpush1.bf16.msra.mxu0 0
    %237 = vmatprep.subr.bf16.mxu0 0
    %238 = vmatpush1.bf16.msra.mxu0 0
    %239 = vmatprep.subr.bf16.mxu0 0
    %240 = vmatpush1.bf16.msra.mxu0 0
    %241 = vmatprep.mubr.bf16.mxu0 0
    %242 = vmatmul.mubr.bf16.gmra.mrb[0].mxu0 %v207
    %v243 = vpop.f32.mrb[0].mxu0
    %v244 = vadd.f32 %v88, %v243
    %v245 = vpop.f32.mrb[0].mxu0
    %v246 = vadd.f32 %v92, %v245
    %v247 = vpop.f32.mrb[0].mxu0
    %v248 = vpop.f32.mrb[0].mxu0
    %249 = vdwg.mxu0
    %250 = vmatprep.subr.bf16.mxu0 %v176
    %251 = vmatpush1.bf16.msra.mxu0 %v175
    %252 = vmatprep.subr.bf16.mxu0 %v184
    %253 = vmatpush1.bf16.msra.mxu0 %v183
    %254 = vmatprep.subr.bf16.mxu0 0
    %255 = vmatpush1.bf16.msra.mxu0 0
    %256 = vmatprep.subr.bf16.mxu0 0
    %257 = vmatpush1.bf16.msra.mxu0 0
    %258 = vmatprep.subr.bf16.mxu0 0
    %259 = vmatpush1.bf16.msra.mxu0 0
    %260 = vmatprep.subr.bf16.mxu0 0
    %261 = vmatpush1.bf16.msra.mxu0 0
    %262 = vmatprep.subr.bf16.mxu0 0
    %263 = vmatpush1.bf16.msra.mxu0 0
    %264 = vmatprep.subr.bf16.mxu0 0
    %265 = vmatpush1.bf16.msra.mxu0 0
    %266 = vmatprep.subr.bf16.mxu0 0
    %267 = vmatpush1.bf16.msra.mxu0 0
    %268 = vmatprep.subr.bf16.mxu0 0
    %269 = vmatpush1.bf16.msra.mxu0 0
    %270 = vmatprep.subr.bf16.mxu0 0
    %271 = vmatpush1.bf16.msra.mxu0 0
    %272 = vmatprep.subr.bf16.mxu0 0
    %273 = vmatpush1.bf16.msra.mxu0 0
    %274 = vmatprep.subr.bf16.mxu0 0
    %275 = vmatpush1.bf16.msra.mxu0 0
    %276 = vmatprep.subr.bf16.mxu0 0
    %277 = vmatpush1.bf16.msra.mxu0 0
    %278 = vmatprep.subr.bf16.mxu0 0
    %279 = vmatpush1.bf16.msra.mxu0 0
    %280 = vmatprep.subr.bf16.mxu0 0
    %281 = vmatpush1.bf16.msra.mxu0 0
    %282 = vmatprep.mubr.bf16.mxu0 0
    %283 = vmatmul.mubr.bf16.gmra.mrb[0].mxu0 %v207
    %v284 = vpop.f32.mrb[0].mxu0
    %v285 = vadd.f32 %v96, %v284
    %v286 = vpop.f32.mrb[0].mxu0
    %v287 = vadd.f32 %v100, %v286
    %v288 = vpop.f32.mrb[0].mxu0
    %v289 = vpop.f32.mrb[0].mxu0
    %290 = vdwg.mxu0
    %291 = vmatprep.subr.bf16.mxu0 %v178
    %292 = vmatpush1.bf16.msra.mxu0 %v177
    %293 = vmatprep.subr.bf16.mxu0 %v186
    %294 = vmatpush1.bf16.msra.mxu0 %v185
    %295 = vmatprep.subr.bf16.mxu0 0
    %296 = vmatpush1.bf16.msra.mxu0 0
    %297 = vmatprep.subr.bf16.mxu0 0
    %298 = vmatpush1.bf16.msra.mxu0 0
    %299 = vmatprep.subr.bf16.mxu0 0
    %300 = vmatpush1.bf16.msra.mxu0 0
    %301 = vmatprep.subr.bf16.mxu0 0
    %302 = vmatpush1.bf16.msra.mxu0 0
    %303 = vmatprep.subr.bf16.mxu0 0
    %304 = vmatpush1.bf16.msra.mxu0 0
    %305 = vmatprep.subr.bf16.mxu0 0
    %306 = vmatpush1.bf16.msra.mxu0 0
    %307 = vmatprep.subr.bf16.mxu0 0
    %308 = vmatpush1.bf16.msra.mxu0 0
    %309 = vmatprep.subr.bf16.mxu0 0
    %310 = vmatpush1.bf16.msra.mxu0 0
    %311 = vmatprep.subr.bf16.mxu0 0
    %312 = vmatpush1.bf16.msra.mxu0 0
    %313 = vmatprep.subr.bf16.mxu0 0
    %314 = vmatpush1.bf16.msra.mxu0 0
    %315 = vmatprep.subr.bf16.mxu0 0
    %316 = vmatpush1.bf16.msra.mxu0 0
    %317 = vmatprep.subr.bf16.mxu0 0
    %318 = vmatpush1.bf16.msra.mxu0 0
    %319 = vmatprep.subr.bf16.mxu0 0
    %320 = vmatpush1.bf16.msra.mxu0 0
    %321 = vmatprep.subr.bf16.mxu0 0
    %322 = vmatpush1.bf16.msra.mxu0 0
    %323 = vmatprep.mubr.bf16.mxu0 0
    %324 = vmatmul.mubr.bf16.gmra.mrb[0].mxu0 %v207
    %v325 = vpop.f32.mrb[0].mxu0
    %v326 = vadd.f32 %v104, %v325
    %v327 = vpop.f32.mrb[0].mxu0
    %v328 = vadd.f32 %v108, %v327
    %v329 = vpop.f32.mrb[0].mxu0
    %v330 = vpop.f32.mrb[0].mxu0
    %331 = vdwg.mxu0
    %332 = vmatprep.subr.bf16.mxu0 %v180
    %333 = vmatpush1.bf16.msra.mxu0 %v179
    %334 = vmatprep.subr.bf16.mxu0 %v188
    %335 = vmatpush1.bf16.msra.mxu0 %v187
    %336 = vmatprep.subr.bf16.mxu0 0
    %337 = vmatpush1.bf16.msra.mxu0 0
    %338 = vmatprep.subr.bf16.mxu0 0
    %339 = vmatpush1.bf16.msra.mxu0 0
    %340 = vmatprep.subr.bf16.mxu0 0
    %341 = vmatpush1.bf16.msra.mxu0 0
    %342 = vmatprep.subr.bf16.mxu0 0
    %343 = vmatpush1.bf16.msra.mxu0 0
    %344 = vmatprep.subr.bf16.mxu0 0
    %345 = vmatpush1.bf16.msra.mxu0 0
    %346 = vmatprep.subr.bf16.mxu0 0
    %347 = vmatpush1.bf16.msra.mxu0 0
    %348 = vmatprep.subr.bf16.mxu0 0
    %349 = vmatpush1.bf16.msra.mxu0 0
    %350 = vmatprep.subr.bf16.mxu0 0
    %351 = vmatpush1.bf16.msra.mxu0 0
    %352 = vmatprep.subr.bf16.mxu0 0
    %353 = vmatpush1.bf16.msra.mxu0 0
    %354 = vmatprep.subr.bf16.mxu0 0
    %355 = vmatpush1.bf16.msra.mxu0 0
    %356 = vmatprep.subr.bf16.mxu0 0
    %357 = vmatpush1.bf16.msra.mxu0 0
    %358 = vmatprep.subr.bf16.mxu0 0
    %359 = vmatpush1.bf16.msra.mxu0 0
    %360 = vmatprep.subr.bf16.mxu0 0
    %361 = vmatpush1.bf16.msra.mxu0 0
    %362 = vmatprep.subr.bf16.mxu0 0
    %363 = vmatpush1.bf16.msra.mxu0 0
    %364 = vmatprep.mubr.bf16.mxu0 0
    %365 = vmatmul.mubr.bf16.gmra.mrb[0].mxu0 %v207
    %v366 = vpop.f32.mrb[0].mxu0
    %v367 = vadd.f32 %v112, %v366
    %v368 = vpop.f32.mrb[0].mxu0
    %v369 = vadd.f32 %v116, %v368
    %v370 = vpop.f32.mrb[0].mxu0
    %v371 = vpop.f32.mrb[0].mxu0
    %372 = vdwg.mxu0
    %v373 = vmax.f32 %v244, 0.0
    %v374 = vmax.f32 %v246, 0.0
    %v375 = vmax.f32 %v285, 0.0
    %v376 = vmax.f32 %v287, 0.0
    %v377 = vmax.f32 %v326, 0.0
    %v378 = vmax.f32 %v328, 0.0
    %v379 = vmax.f32 %v367, 0.0
    %v380 = vmax.f32 %v369, 0.0
    %v381 = vpack.c.bf16 %v373, %v373
    %v382 = vpack.c.bf16 %v374, %v374
    %v383 = vpack.c.bf16 %v375, %v375
    %v384 = vpack.c.bf16 %v376, %v376
    %v385 = vpack.c.bf16 %v377, %v377
    %v386 = vpack.c.bf16 %v378, %v378
    %v387 = vpack.c.bf16 %v379, %v379
    %v388 = vpack.c.bf16 %v380, %v380
    %v389 = vld [vmem:[#allocation2] sm:$0xff]
    %v390 = vld [vmem:[#allocation2 + $0x8] sm:$0xff]
    %v391 = vld [vmem:[#allocation2 + $0x10] sm:$0xff]
    %v392 = vld [vmem:[#allocation2 + $0x18] sm:$0xff]
    %v393 = vld [vmem:[#allocation2 + $0x20] sm:$0xff]
    %v394 = vld [vmem:[#allocation2 + $0x28] sm:$0xff]
    %v395 = vld [vmem:[#allocation2 + $0x30] sm:$0xff]
    %v396 = vld [vmem:[#allocation2 + $0x38] sm:$0xff]
    %v397 = vld [vmem:[#allocation2 + $0x40] sm:$0xff]
    %v398 = vld [vmem:[#allocation2 + $0x48] sm:$0xff]
    %v399 = vld [vmem:[#allocation2 + $0x50] sm:$0xff]
    %v400 = vld [vmem:[#allocation2 + $0x58] sm:$0xff]
    %v401 = vld [vmem:[#allocation2 + $0x60] sm:$0xff]
    %v402 = vld [vmem:[#allocation2 + $0x68] sm:$0xff]
    %v403 = vld [vmem:[#allocation2 + $0x70] sm:$0xff]
    %v404 = vld [vmem:[#allocation2 + $0x78] sm:$0xff]
    %v405 = vld [vmem:[#allocation2 + $0x80] sm:$0xff]
    %v406 = vld [vmem:[#allocation2 + $0x88] sm:$0xff]
    %v407 = vld [vmem:[#allocation2 + $0x90] sm:$0xff]
    %v408 = vld [vmem:[#allocation2 + $0x98] sm:$0xff]
    %v409 = vld [vmem:[#allocation2 + $0xa0] sm:$0xff]
    %v410 = vld [vmem:[#allocation2 + $0xa8] sm:$0xff]
    %v411 = vld [vmem:[#allocation2 + $0xb0] sm:$0xff]
    %v412 = vld [vmem:[#allocation2 + $0xb8] sm:$0xff]
    %v413 = vld [vmem:[#allocation2 + $0xc0] sm:$0xff]
    %v414 = vld [vmem:[#allocation2 + $0xc8] sm:$0xff]
    %v415 = vld [vmem:[#allocation2 + $0xd0] sm:$0xff]
    %v416 = vld [vmem:[#allocation2 + $0xd8] sm:$0xff]
    %v417 = vld [vmem:[#allocation2 + $0xe0] sm:$0xff]
    %v418 = vld [vmem:[#allocation2 + $0xe8] sm:$0xff]
    %v419 = vld [vmem:[#allocation2 + $0xf0] sm:$0xff]
    %v420 = vld [vmem:[#allocation2 + $0xf8] sm:$0xff]
    %v421 = vld [vmem:[#allocation2 + $0x100] sm:$0xff]
    %v422 = vld [vmem:[#allocation2 + $0x108] sm:$0xff]
    %v423 = vld [vmem:[#allocation2 + $0x110] sm:$0xff]
    %v424 = vld [vmem:[#allocation2 + $0x118] sm:$0xff]
    %v425 = vld [vmem:[#allocation2 + $0x120] sm:$0xff]
    %v426 = vld [vmem:[#allocation2 + $0x128] sm:$0xff]
    %v427 = vld [vmem:[#allocation2 + $0x130] sm:$0xff]
    %v428 = vld [vmem:[#allocation2 + $0x138] sm:$0xff]
    %v429 = vld [vmem:[#allocation2 + $0x140] sm:$0xff]
    %v430 = vld [vmem:[#allocation2 + $0x148] sm:$0xff]
    %v431 = vld [vmem:[#allocation2 + $0x150] sm:$0xff]
    %v432 = vld [vmem:[#allocation2 + $0x158] sm:$0xff]
    %v433 = vld [vmem:[#allocation2 + $0x160] sm:$0xff]
    %v434 = vld [vmem:[#allocation2 + $0x168] sm:$0xff]
    %v435 = vld [vmem:[#allocation2 + $0x170] sm:$0xff]
    %v436 = vld [vmem:[#allocation2 + $0x178] sm:$0xff]
    %v437 = vld [vmem:[#allocation2 + $0x180] sm:$0xff]
    %v438 = vld [vmem:[#allocation2 + $0x188] sm:$0xff]
    %v439 = vld [vmem:[#allocation2 + $0x190] sm:$0xff]
    %v440 = vld [vmem:[#allocation2 + $0x198] sm:$0xff]
    %v441 = vld [vmem:[#allocation2 + $0x1a0] sm:$0xff]
    %v442 = vld [vmem:[#allocation2 + $0x1a8] sm:$0xff]
    %v443 = vld [vmem:[#allocation2 + $0x1b0] sm:$0xff]
    %v444 = vld [vmem:[#allocation2 + $0x1b8] sm:$0xff]
    %v445 = vld [vmem:[#allocation2 + $0x1c0] sm:$0xff]
    %v446 = vld [vmem:[#allocation2 + $0x1c8] sm:$0xff]
    %v447 = vld [vmem:[#allocation2 + $0x1d0] sm:$0xff]
    %v448 = vld [vmem:[#allocation2 + $0x1d8] sm:$0xff]
    %v449 = vld [vmem:[#allocation2 + $0x1e0] sm:$0xff]
    %v450 = vld [vmem:[#allocation2 + $0x1e8] sm:$0xff]
    %v451 = vld [vmem:[#allocation2 + $0x1f0] sm:$0xff]
    %v452 = vld [vmem:[#allocation2 + $0x1f8] sm:$0xff]
    %v453 = vld [vmem:[#allocation2 + $0x200] sm:$0xff]
    %v454 = vld [vmem:[#allocation2 + $0x208] sm:$0xff]
    %v455 = vld [vmem:[#allocation2 + $0x210] sm:$0xff]
    %v456 = vld [vmem:[#allocation2 + $0x218] sm:$0xff]
    %v457 = vld [vmem:[#allocation2 + $0x220] sm:$0xff]
    %v458 = vld [vmem:[#allocation2 + $0x228] sm:$0xff]
    %v459 = vld [vmem:[#allocation2 + $0x230] sm:$0xff]
    %v460 = vld [vmem:[#allocation2 + $0x238] sm:$0xff]
    %v461 = vld [vmem:[#allocation2 + $0x240] sm:$0xff]
    %v462 = vld [vmem:[#allocation2 + $0x248] sm:$0xff]
    %v463 = vld [vmem:[#allocation2 + $0x250] sm:$0xff]
    %v464 = vld [vmem:[#allocation2 + $0x258] sm:$0xff]
    %v465 = vld [vmem:[#allocation2 + $0x260] sm:$0xff]
    %v466 = vld [vmem:[#allocation2 + $0x268] sm:$0xff]
    %v467 = vld [vmem:[#allocation2 + $0x270] sm:$0xff]
    %v468 = vld [vmem:[#allocation2 + $0x278] sm:$0xff]
    %v469 = vld [vmem:[#allocation2 + $0x280] sm:$0xff]
    %v470 = vld [vmem:[#allocation2 + $0x288] sm:$0xff]
    %v471 = vld [vmem:[#allocation2 + $0x290] sm:$0xff]
    %v472 = vld [vmem:[#allocation2 + $0x298] sm:$0xff]
    %v473 = vld [vmem:[#allocation2 + $0x2a0] sm:$0xff]
    %v474 = vld [vmem:[#allocation2 + $0x2a8] sm:$0xff]
    %v475 = vld [vmem:[#allocation2 + $0x2b0] sm:$0xff]
    %v476 = vld [vmem:[#allocation2 + $0x2b8] sm:$0xff]
    %v477 = vld [vmem:[#allocation2 + $0x2c0] sm:$0xff]
    %v478 = vld [vmem:[#allocation2 + $0x2c8] sm:$0xff]
    %v479 = vld [vmem:[#allocation2 + $0x2d0] sm:$0xff]
    %v480 = vld [vmem:[#allocation2 + $0x2d8] sm:$0xff]
    %v481 = vld [vmem:[#allocation2 + $0x2e0] sm:$0xff]
    %v482 = vld [vmem:[#allocation2 + $0x2e8] sm:$0xff]
    %v483 = vld [vmem:[#allocation2 + $0x2f0] sm:$0xff]
    %v484 = vld [vmem:[#allocation2 + $0x2f8] sm:$0xff]
    %v485 = vld [vmem:[#allocation2 + $0x300] sm:$0xff]
    %v486 = vld [vmem:[#allocation2 + $0x308] sm:$0xff]
    %v487 = vld [vmem:[#allocation2 + $0x310] sm:$0xff]
    %v488 = vld [vmem:[#allocation2 + $0x318] sm:$0xff]
    %v489 = vld [vmem:[#allocation2 + $0x320] sm:$0xff]
    %v490 = vld [vmem:[#allocation2 + $0x328] sm:$0xff]
    %v491 = vld [vmem:[#allocation2 + $0x330] sm:$0xff]
    %v492 = vld [vmem:[#allocation2 + $0x338] sm:$0xff]
    %v493 = vld [vmem:[#allocation2 + $0x340] sm:$0xff]
    %v494 = vld [vmem:[#allocation2 + $0x348] sm:$0xff]
    %v495 = vld [vmem:[#allocation2 + $0x350] sm:$0xff]
    %v496 = vld [vmem:[#allocation2 + $0x358] sm:$0xff]
    %v497 = vld [vmem:[#allocation2 + $0x360] sm:$0xff]
    %v498 = vld [vmem:[#allocation2 + $0x368] sm:$0xff]
    %v499 = vld [vmem:[#allocation2 + $0x370] sm:$0xff]
    %v500 = vld [vmem:[#allocation2 + $0x378] sm:$0xff]
    %v501 = vld [vmem:[#allocation2 + $0x380] sm:$0xff]
    %v502 = vld [vmem:[#allocation2 + $0x388] sm:$0xff]
    %v503 = vld [vmem:[#allocation2 + $0x390] sm:$0xff]
    %v504 = vld [vmem:[#allocation2 + $0x398] sm:$0xff]
    %v505 = vld [vmem:[#allocation2 + $0x3a0] sm:$0xff]
    %v506 = vld [vmem:[#allocation2 + $0x3a8] sm:$0xff]
    %v507 = vld [vmem:[#allocation2 + $0x3b0] sm:$0xff]
    %v508 = vld [vmem:[#allocation2 + $0x3b8] sm:$0xff]
    %v509 = vld [vmem:[#allocation2 + $0x3c0] sm:$0xff]
    %v510 = vld [vmem:[#allocation2 + $0x3c8] sm:$0xff]
    %v511 = vld [vmem:[#allocation2 + $0x3d0] sm:$0xff]
    %v512 = vld [vmem:[#allocation2 + $0x3d8] sm:$0xff]
    %v513 = vld [vmem:[#allocation2 + $0x3e0] sm:$0xff]
    %v514 = vld [vmem:[#allocation2 + $0x3e8] sm:$0xff]
    %v515 = vld [vmem:[#allocation2 + $0x3f0] sm:$0xff]
    %v516 = vld [vmem:[#allocation2 + $0x3f8] sm:$0xff]
    %v517 = vld [vmem:[%s4] sm:$0xf]
    %v519 = vlaneseq
    %v520 = vshrl.u32 %v519, 7
    %v521 = vsub.s32 0, %v520
    %v522 = vrot.slane %v517, %v521
    %v523 = vlaneseq
    %v524 = vshrl.u32 %v523, 7
    %v525 = vsub.s32 1, %v524
    %v526 = vrot.slane %v517, %v525
    %v527 = vlaneseq
    %v528 = vshrl.u32 %v527, 7
    %v529 = vsub.s32 2, %v528
    %v530 = vrot.slane %v517, %v529
    %v531 = vlaneseq
    %v532 = vshrl.u32 %v531, 7
    %v533 = vsub.s32 3, %v532
    %v534 = vrot.slane %v517, %v533
    %v667 = vunpack.c.l.b16 %v389
    %v668 = vunpack.c.h.b16 %v389
    %v669 = vunpack.c.l.b16 %v390
    %v670 = vunpack.c.h.b16 %v390
    %v671 = vunpack.c.l.b16 %v391
    %v672 = vunpack.c.h.b16 %v391
    %v673 = vunpack.c.l.b16 %v392
    %v674 = vunpack.c.h.b16 %v392
    %v675 = vunpack.c.l.b16 %v393
    %v676 = vunpack.c.h.b16 %v393
    %v677 = vunpack.c.l.b16 %v394
    %v678 = vunpack.c.h.b16 %v394
    %v679 = vunpack.c.l.b16 %v395
    %v680 = vunpack.c.h.b16 %v395
    %v681 = vunpack.c.l.b16 %v396
    %v682 = vunpack.c.h.b16 %v396
    %v683 = vunpack.c.l.b16 %v397
    %v684 = vunpack.c.h.b16 %v397
    %v685 = vunpack.c.l.b16 %v398
    %v686 = vunpack.c.h.b16 %v398
    %v687 = vunpack.c.l.b16 %v399
    %v688 = vunpack.c.h.b16 %v399
    %v689 = vunpack.c.l.b16 %v400
    %v690 = vunpack.c.h.b16 %v400
    %v691 = vunpack.c.l.b16 %v401
    %v692 = vunpack.c.h.b16 %v401
    %v693 = vunpack.c.l.b16 %v402
    %v694 = vunpack.c.h.b16 %v402
    %v695 = vunpack.c.l.b16 %v403
    %v696 = vunpack.c.h.b16 %v403
    %v697 = vunpack.c.l.b16 %v404
    %v698 = vunpack.c.h.b16 %v404
    %v699 = vunpack.c.l.b16 %v405
    %v700 = vunpack.c.h.b16 %v405
    %v701 = vunpack.c.l.b16 %v406
    %v702 = vunpack.c.h.b16 %v406
    %v703 = vunpack.c.l.b16 %v407
    %v704 = vunpack.c.h.b16 %v407
    %v705 = vunpack.c.l.b16 %v408
    %v706 = vunpack.c.h.b16 %v408
    %v707 = vunpack.c.l.b16 %v409
    %v708 = vunpack.c.h.b16 %v409
    %v709 = vunpack.c.l.b16 %v410
    %v710 = vunpack.c.h.b16 %v410
    %v711 = vunpack.c.l.b16 %v411
    %v712 = vunpack.c.h.b16 %v411
    %v713 = vunpack.c.l.b16 %v412
    %v714 = vunpack.c.h.b16 %v412
    %v715 = vunpack.c.l.b16 %v413
    %v716 = vunpack.c.h.b16 %v413
    %v717 = vunpack.c.l.b16 %v414
    %v718 = vunpack.c.h.b16 %v414
    %v719 = vunpack.c.l.b16 %v415
    %v720 = vunpack.c.h.b16 %v415
    %v721 = vunpack.c.l.b16 %v416
    %v722 = vunpack.c.h.b16 %v416
    %v723 = vunpack.c.l.b16 %v417
    %v724 = vunpack.c.h.b16 %v417
    %v725 = vunpack.c.l.b16 %v418
    %v726 = vunpack.c.h.b16 %v418
    %v727 = vunpack.c.l.b16 %v419
    %v728 = vunpack.c.h.b16 %v419
    %v729 = vunpack.c.l.b16 %v420
    %v730 = vunpack.c.h.b16 %v420
    %v731 = vunpack.c.l.b16 %v421
    %v732 = vunpack.c.h.b16 %v421
    %v733 = vunpack.c.l.b16 %v422
    %v734 = vunpack.c.h.b16 %v422
    %v735 = vunpack.c.l.b16 %v423
    %v736 = vunpack.c.h.b16 %v423
    %v737 = vunpack.c.l.b16 %v424
    %v738 = vunpack.c.h.b16 %v424
    %v739 = vunpack.c.l.b16 %v425
    %v740 = vunpack.c.h.b16 %v425
    %v741 = vunpack.c.l.b16 %v426
    %v742 = vunpack.c.h.b16 %v426
    %v743 = vunpack.c.l.b16 %v427
    %v744 = vunpack.c.h.b16 %v427
    %v745 = vunpack.c.l.b16 %v428
    %v746 = vunpack.c.h.b16 %v428
    %v747 = vunpack.c.l.b16 %v429
    %v748 = vunpack.c.h.b16 %v429
    %v749 = vunpack.c.l.b16 %v430
    %v750 = vunpack.c.h.b16 %v430
    %v751 = vunpack.c.l.b16 %v431
    %v752 = vunpack.c.h.b16 %v431
    %v753 = vunpack.c.l.b16 %v432
    %v754 = vunpack.c.h.b16 %v432
    %v755 = vunpack.c.l.b16 %v433
    %v756 = vunpack.c.h.b16 %v433
    %v757 = vunpack.c.l.b16 %v434
    %v758 = vunpack.c.h.b16 %v434
    %v759 = vunpack.c.l.b16 %v435
    %v760 = vunpack.c.h.b16 %v435
    %v761 = vunpack.c.l.b16 %v436
    %v762 = vunpack.c.h.b16 %v436
    %v763 = vunpack.c.l.b16 %v437
    %v764 = vunpack.c.h.b16 %v437
    %v765 = vunpack.c.l.b16 %v438
    %v766 = vunpack.c.h.b16 %v438
    %v767 = vunpack.c.l.b16 %v439
    %v768 = vunpack.c.h.b16 %v439
    %v769 = vunpack.c.l.b16 %v440
    %v770 = vunpack.c.h.b16 %v440
    %v771 = vunpack.c.l.b16 %v441
    %v772 = vunpack.c.h.b16 %v441
    %v773 = vunpack.c.l.b16 %v442
    %v774 = vunpack.c.h.b16 %v442
    %v775 = vunpack.c.l.b16 %v443
    %v776 = vunpack.c.h.b16 %v443
    %v777 = vunpack.c.l.b16 %v444
    %v778 = vunpack.c.h.b16 %v444
    %v779 = vunpack.c.l.b16 %v445
    %v780 = vunpack.c.h.b16 %v445
    %v781 = vunpack.c.l.b16 %v446
    %v782 = vunpack.c.h.b16 %v446
    %v783 = vunpack.c.l.b16 %v447
    %v784 = vunpack.c.h.b16 %v447
    %v785 = vunpack.c.l.b16 %v448
    %v786 = vunpack.c.h.b16 %v448
    %v787 = vunpack.c.l.b16 %v449
    %v788 = vunpack.c.h.b16 %v449
    %v789 = vunpack.c.l.b16 %v450
    %v790 = vunpack.c.h.b16 %v450
    %v791 = vunpack.c.l.b16 %v451
    %v792 = vunpack.c.h.b16 %v451
    %v793 = vunpack.c.l.b16 %v452
    %v794 = vunpack.c.h.b16 %v452
    %v795 = vunpack.c.l.b16 %v453
    %v796 = vunpack.c.h.b16 %v453
    %v797 = vunpack.c.l.b16 %v454
    %v798 = vunpack.c.h.b16 %v454
    %v799 = vunpack.c.l.b16 %v455
    %v800 = vunpack.c.h.b16 %v455
    %v801 = vunpack.c.l.b16 %v456
    %v802 = vunpack.c.h.b16 %v456
    %v803 = vunpack.c.l.b16 %v457
    %v804 = vunpack.c.h.b16 %v457
    %v805 = vunpack.c.l.b16 %v458
    %v806 = vunpack.c.h.b16 %v458
    %v807 = vunpack.c.l.b16 %v459
    %v808 = vunpack.c.h.b16 %v459
    %v809 = vunpack.c.l.b16 %v460
    %v810 = vunpack.c.h.b16 %v460
    %v811 = vunpack.c.l.b16 %v461
    %v812 = vunpack.c.h.b16 %v461
    %v813 = vunpack.c.l.b16 %v462
    %v814 = vunpack.c.h.b16 %v462
    %v815 = vunpack.c.l.b16 %v463
    %v816 = vunpack.c.h.b16 %v463
    %v817 = vunpack.c.l.b16 %v464
    %v818 = vunpack.c.h.b16 %v464
    %v819 = vunpack.c.l.b16 %v465
    %v820 = vunpack.c.h.b16 %v465
    %v821 = vunpack.c.l.b16 %v466
    %v822 = vunpack.c.h.b16 %v466
    %v823 = vunpack.c.l.b16 %v467
    %v824 = vunpack.c.h.b16 %v467
    %v825 = vunpack.c.l.b16 %v468
    %v826 = vunpack.c.h.b16 %v468
    %v827 = vunpack.c.l.b16 %v469
    %v828 = vunpack.c.h.b16 %v469
    %v829 = vunpack.c.l.b16 %v470
    %v830 = vunpack.c.h.b16 %v470
    %v831 = vunpack.c.l.b16 %v471
    %v832 = vunpack.c.h.b16 %v471
    %v833 = vunpack.c.l.b16 %v472
    %v834 = vunpack.c.h.b16 %v472
    %v835 = vunpack.c.l.b16 %v473
    %v836 = vunpack.c.h.b16 %v473
    %v837 = vunpack.c.l.b16 %v474
    %v838 = vunpack.c.h.b16 %v474
    %v839 = vunpack.c.l.b16 %v475
    %v840 = vunpack.c.h.b16 %v475
    %v841 = vunpack.c.l.b16 %v476
    %v842 = vunpack.c.h.b16 %v476
    %v843 = vunpack.c.l.b16 %v477
    %v844 = vunpack.c.h.b16 %v477
    %v845 = vunpack.c.l.b16 %v478
    %v846 = vunpack.c.h.b16 %v478
    %v847 = vunpack.c.l.b16 %v479
    %v848 = vunpack.c.h.b16 %v479
    %v849 = vunpack.c.l.b16 %v480
    %v850 = vunpack.c.h.b16 %v480
    %v851 = vunpack.c.l.b16 %v481
    %v852 = vunpack.c.h.b16 %v481
    %v853 = vunpack.c.l.b16 %v482
    %v854 = vunpack.c.h.b16 %v482
    %v855 = vunpack.c.l.b16 %v483
    %v856 = vunpack.c.h.b16 %v483
    %v857 = vunpack.c.l.b16 %v484
    %v858 = vunpack.c.h.b16 %v484
    %v859 = vunpack.c.l.b16 %v485
    %v860 = vunpack.c.h.b16 %v485
    %v861 = vunpack.c.l.b16 %v486
    %v862 = vunpack.c.h.b16 %v486
    %v863 = vunpack.c.l.b16 %v487
    %v864 = vunpack.c.h.b16 %v487
    %v865 = vunpack.c.l.b16 %v488
    %v866 = vunpack.c.h.b16 %v488
    %v867 = vunpack.c.l.b16 %v489
    %v868 = vunpack.c.h.b16 %v489
    %v869 = vunpack.c.l.b16 %v490
    %v870 = vunpack.c.h.b16 %v490
    %v871 = vunpack.c.l.b16 %v491
    %v872 = vunpack.c.h.b16 %v491
    %v873 = vunpack.c.l.b16 %v492
    %v874 = vunpack.c.h.b16 %v492
    %v875 = vunpack.c.l.b16 %v493
    %v876 = vunpack.c.h.b16 %v493
    %v877 = vunpack.c.l.b16 %v494
    %v878 = vunpack.c.h.b16 %v494
    %v879 = vunpack.c.l.b16 %v495
    %v880 = vunpack.c.h.b16 %v495
    %v881 = vunpack.c.l.b16 %v496
    %v882 = vunpack.c.h.b16 %v496
    %v883 = vunpack.c.l.b16 %v497
    %v884 = vunpack.c.h.b16 %v497
    %v885 = vunpack.c.l.b16 %v498
    %v886 = vunpack.c.h.b16 %v498
    %v887 = vunpack.c.l.b16 %v499
    %v888 = vunpack.c.h.b16 %v499
    %v889 = vunpack.c.l.b16 %v500
    %v890 = vunpack.c.h.b16 %v500
    %v891 = vunpack.c.l.b16 %v501
    %v892 = vunpack.c.h.b16 %v501
    %v893 = vunpack.c.l.b16 %v502
    %v894 = vunpack.c.h.b16 %v502
    %v895 = vunpack.c.l.b16 %v503
    %v896 = vunpack.c.h.b16 %v503
    %v897 = vunpack.c.l.b16 %v504
    %v898 = vunpack.c.h.b16 %v504
    %v899 = vunpack.c.l.b16 %v505
    %v900 = vunpack.c.h.b16 %v505
    %v901 = vunpack.c.l.b16 %v506
    %v902 = vunpack.c.h.b16 %v506
    %v903 = vunpack.c.l.b16 %v507
    %v904 = vunpack.c.h.b16 %v507
    %v905 = vunpack.c.l.b16 %v508
    %v906 = vunpack.c.h.b16 %v508
    %v907 = vunpack.c.l.b16 %v509
    %v908 = vunpack.c.h.b16 %v509
    %v909 = vunpack.c.l.b16 %v510
    %v910 = vunpack.c.h.b16 %v510
    %v911 = vunpack.c.l.b16 %v511
    %v912 = vunpack.c.h.b16 %v511
    %v913 = vunpack.c.l.b16 %v512
    %v914 = vunpack.c.h.b16 %v512
    %v915 = vunpack.c.l.b16 %v513
    %v916 = vunpack.c.h.b16 %v513
    %v917 = vunpack.c.l.b16 %v514
    %v918 = vunpack.c.h.b16 %v514
    %v919 = vunpack.c.l.b16 %v515
    %v920 = vunpack.c.h.b16 %v515
    %v921 = vunpack.c.l.b16 %v516
    %v922 = vunpack.c.h.b16 %v516
    %v923 = vpack.c.b16 %v671, %v667
    %v924 = vpack.c.b16 %v672, %v668
    %v925 = vpack.c.b16 %v673, %v669
    %v926 = vpack.c.b16 %v674, %v670
    %v927 = vpack.c.b16 %v679, %v675
    %v928 = vpack.c.b16 %v680, %v676
    %v929 = vpack.c.b16 %v681, %v677
    %v930 = vpack.c.b16 %v682, %v678
    %v931 = vpack.c.b16 %v687, %v683
    %v932 = vpack.c.b16 %v688, %v684
    %v933 = vpack.c.b16 %v689, %v685
    %v934 = vpack.c.b16 %v690, %v686
    %v935 = vpack.c.b16 %v695, %v691
    %v936 = vpack.c.b16 %v696, %v692
    %v937 = vpack.c.b16 %v697, %v693
    %v938 = vpack.c.b16 %v698, %v694
    %v939 = vpack.c.b16 %v703, %v699
    %v940 = vpack.c.b16 %v704, %v700
    %v941 = vpack.c.b16 %v705, %v701
    %v942 = vpack.c.b16 %v706, %v702
    %v943 = vpack.c.b16 %v711, %v707
    %v944 = vpack.c.b16 %v712, %v708
    %v945 = vpack.c.b16 %v713, %v709
    %v946 = vpack.c.b16 %v714, %v710
    %v947 = vpack.c.b16 %v719, %v715
    %v948 = vpack.c.b16 %v720, %v716
    %v949 = vpack.c.b16 %v721, %v717
    %v950 = vpack.c.b16 %v722, %v718
    %v951 = vpack.c.b16 %v727, %v723
    %v952 = vpack.c.b16 %v728, %v724
    %v953 = vpack.c.b16 %v729, %v725
    %v954 = vpack.c.b16 %v730, %v726
    %v955 = vpack.c.b16 %v735, %v731
    %v956 = vpack.c.b16 %v736, %v732
    %v957 = vpack.c.b16 %v737, %v733
    %v958 = vpack.c.b16 %v738, %v734
    %v959 = vpack.c.b16 %v743, %v739
    %v960 = vpack.c.b16 %v744, %v740
    %v961 = vpack.c.b16 %v745, %v741
    %v962 = vpack.c.b16 %v746, %v742
    %v963 = vpack.c.b16 %v751, %v747
    %v964 = vpack.c.b16 %v752, %v748
    %v965 = vpack.c.b16 %v753, %v749
    %v966 = vpack.c.b16 %v754, %v750
    %v967 = vpack.c.b16 %v759, %v755
    %v968 = vpack.c.b16 %v760, %v756
    %v969 = vpack.c.b16 %v761, %v757
    %v970 = vpack.c.b16 %v762, %v758
    %v971 = vpack.c.b16 %v767, %v763
    %v972 = vpack.c.b16 %v768, %v764
    %v973 = vpack.c.b16 %v769, %v765
    %v974 = vpack.c.b16 %v770, %v766
    %v975 = vpack.c.b16 %v775, %v771
    %v976 = vpack.c.b16 %v776, %v772
    %v977 = vpack.c.b16 %v777, %v773
    %v978 = vpack.c.b16 %v778, %v774
    %v979 = vpack.c.b16 %v783, %v779
    %v980 = vpack.c.b16 %v784, %v780
    %v981 = vpack.c.b16 %v785, %v781
    %v982 = vpack.c.b16 %v786, %v782
    %v983 = vpack.c.b16 %v791, %v787
    %v984 = vpack.c.b16 %v792, %v788
    %v985 = vpack.c.b16 %v793, %v789
    %v986 = vpack.c.b16 %v794, %v790
    %v987 = vpack.c.b16 %v799, %v795
    %v988 = vpack.c.b16 %v800, %v796
    %v989 = vpack.c.b16 %v801, %v797
    %v990 = vpack.c.b16 %v802, %v798
    %v991 = vpack.c.b16 %v807, %v803
    %v992 = vpack.c.b16 %v808, %v804
    %v993 = vpack.c.b16 %v809, %v805
    %v994 = vpack.c.b16 %v810, %v806
    %v995 = vpack.c.b16 %v815, %v811
    %v996 = vpack.c.b16 %v816, %v812
    %v997 = vpack.c.b16 %v817, %v813
    %v998 = vpack.c.b16 %v818, %v814
    %v999 = vpack.c.b16 %v823, %v819
    %v1000 = vpack.c.b16 %v824, %v820
    %v1001 = vpack.c.b16 %v825, %v821
    %v1002 = vpack.c.b16 %v826, %v822
    %v1003 = vpack.c.b16 %v831, %v827
    %v1004 = vpack.c.b16 %v832, %v828
    %v1005 = vpack.c.b16 %v833, %v829
    %v1006 = vpack.c.b16 %v834, %v830
    %v1007 = vpack.c.b16 %v839, %v835
    %v1008 = vpack.c.b16 %v840, %v836
    %v1009 = vpack.c.b16 %v841, %v837
    %v1010 = vpack.c.b16 %v842, %v838
    %v1011 = vpack.c.b16 %v847, %v843
    %v1012 = vpack.c.b16 %v848, %v844
    %v1013 = vpack.c.b16 %v849, %v845
    %v1014 = vpack.c.b16 %v850, %v846
    %v1015 = vpack.c.b16 %v855, %v851
    %v1016 = vpack.c.b16 %v856, %v852
    %v1017 = vpack.c.b16 %v857, %v853
    %v1018 = vpack.c.b16 %v858, %v854
    %v1019 = vpack.c.b16 %v863, %v859
    %v1020 = vpack.c.b16 %v864, %v860
    %v1021 = vpack.c.b16 %v865, %v861
    %v1022 = vpack.c.b16 %v866, %v862
    %v1023 = vpack.c.b16 %v871, %v867
    %v1024 = vpack.c.b16 %v872, %v868
    %v1025 = vpack.c.b16 %v873, %v869
    %v1026 = vpack.c.b16 %v874, %v870
    %v1027 = vpack.c.b16 %v879, %v875
    %v1028 = vpack.c.b16 %v880, %v876
    %v1029 = vpack.c.b16 %v881, %v877
    %v1030 = vpack.c.b16 %v882, %v878
    %v1031 = vpack.c.b16 %v887, %v883
    %v1032 = vpack.c.b16 %v888, %v884
    %v1033 = vpack.c.b16 %v889, %v885
    %v1034 = vpack.c.b16 %v890, %v886
    %v1035 = vpack.c.b16 %v895, %v891
    %v1036 = vpack.c.b16 %v896, %v892
    %v1037 = vpack.c.b16 %v897, %v893
    %v1038 = vpack.c.b16 %v898, %v894
    %v1039 = vpack.c.b16 %v903, %v899
    %v1040 = vpack.c.b16 %v904, %v900
    %v1041 = vpack.c.b16 %v905, %v901
    %v1042 = vpack.c.b16 %v906, %v902
    %v1043 = vpack.c.b16 %v911, %v907
    %v1044 = vpack.c.b16 %v912, %v908
    %v1045 = vpack.c.b16 %v913, %v909
    %v1046 = vpack.c.b16 %v914, %v910
    %v1047 = vpack.c.b16 %v919, %v915
    %v1048 = vpack.c.b16 %v920, %v916
    %v1049 = vpack.c.b16 %v921, %v917
    %v1050 = vpack.c.b16 %v922, %v918
    %1179 = vmatprep.subr.bf16.mxu0 %v924
    %1180 = vmatpush1.bf16.msra.mxu0 %v923
    %1181 = vmatprep.subr.bf16.mxu0 %v928
    %1182 = vmatpush1.bf16.msra.mxu0 %v927
    %1183 = vmatprep.subr.bf16.mxu0 %v932
    %1184 = vmatpush1.bf16.msra.mxu0 %v931
    %1185 = vmatprep.subr.bf16.mxu0 %v936
    %1186 = vmatpush1.bf16.msra.mxu0 %v935
    %1187 = vmatprep.subr.bf16.mxu0 %v940
    %1188 = vmatpush1.bf16.msra.mxu0 %v939
    %1189 = vmatprep.subr.bf16.mxu0 %v944
    %1190 = vmatpush1.bf16.msra.mxu0 %v943
    %1191 = vmatprep.subr.bf16.mxu0 %v948
    %1192 = vmatpush1.bf16.msra.mxu0 %v947
    %1193 = vmatprep.subr.bf16.mxu0 %v952
    %1194 = vmatpush1.bf16.msra.mxu0 %v951
    %1195 = vmatprep.subr.bf16.mxu0 %v956
    %1196 = vmatpush1.bf16.msra.mxu0 %v955
    %1197 = vmatprep.subr.bf16.mxu0 %v960
    %1198 = vmatpush1.bf16.msra.mxu0 %v959
    %1199 = vmatprep.subr.bf16.mxu0 %v964
    %1200 = vmatpush1.bf16.msra.mxu0 %v963
    %1201 = vmatprep.subr.bf16.mxu0 %v968
    %1202 = vmatpush1.bf16.msra.mxu0 %v967
    %1203 = vmatprep.subr.bf16.mxu0 %v972
    %1204 = vmatpush1.bf16.msra.mxu0 %v971
    %1205 = vmatprep.subr.bf16.mxu0 %v976
    %1206 = vmatpush1.bf16.msra.mxu0 %v975
    %1207 = vmatprep.subr.bf16.mxu0 %v980
    %1208 = vmatpush1.bf16.msra.mxu0 %v979
    %1209 = vmatprep.subr.bf16.mxu0 %v984
    %1210 = vmatpush1.bf16.msra.mxu0 %v983
    %1211 = vmatprep.mubr.bf16.mxu0 %v382
    %1212 = vmatmul.mubr.bf16.gmra.mrb[0].mxu0 %v381
    %v1213 = vpop.f32.mrb[0].mxu0
    %v1214 = vadd.f32 %v522, %v1213
    %v1215 = vpop.f32.mrb[0].mxu0
    %v1216 = vadd.f32 %v526, %v1215
    %v1217 = vpop.f32.mrb[0].mxu0
    %v1218 = vpop.f32.mrb[0].mxu0
    %1219 = vdwg.mxu0
    %1220 = vmatprep.subr.bf16.mxu0 %v988
    %1221 = vmatpush1.bf16.msra.mxu0 %v987
    %1222 = vmatprep.subr.bf16.mxu0 %v992
    %1223 = vmatpush1.bf16.msra.mxu0 %v991
    %1224 = vmatprep.subr.bf16.mxu0 %v996
    %1225 = vmatpush1.bf16.msra.mxu0 %v995
    %1226 = vmatprep.subr.bf16.mxu0 %v1000
    %1227 = vmatpush1.bf16.msra.mxu0 %v999
    %1228 = vmatprep.subr.bf16.mxu0 %v1004
    %1229 = vmatpush1.bf16.msra.mxu0 %v1003
    %1230 = vmatprep.subr.bf16.mxu0 %v1008
    %1231 = vmatpush1.bf16.msra.mxu0 %v1007
    %1232 = vmatprep.subr.bf16.mxu0 %v1012
    %1233 = vmatpush1.bf16.msra.mxu0 %v1011
    %1234 = vmatprep.subr.bf16.mxu0 %v1016
    %1235 = vmatpush1.bf16.msra.mxu0 %v1015
    %1236 = vmatprep.subr.bf16.mxu0 %v1020
    %1237 = vmatpush1.bf16.msra.mxu0 %v1019
    %1238 = vmatprep.subr.bf16.mxu0 %v1024
    %1239 = vmatpush1.bf16.msra.mxu0 %v1023
    %1240 = vmatprep.subr.bf16.mxu0 %v1028
    %1241 = vmatpush1.bf16.msra.mxu0 %v1027
    %1242 = vmatprep.subr.bf16.mxu0 %v1032
    %1243 = vmatpush1.bf16.msra.mxu0 %v1031
    %1244 = vmatprep.subr.bf16.mxu0 %v1036
    %1245 = vmatpush1.bf16.msra.mxu0 %v1035
    %1246 = vmatprep.subr.bf16.mxu0 %v1040
    %1247 = vmatpush1.bf16.msra.mxu0 %v1039
    %1248 = vmatprep.subr.bf16.mxu0 %v1044
    %1249 = vmatpush1.bf16.msra.mxu0 %v1043
    %1250 = vmatprep.subr.bf16.mxu0 %v1048
    %1251 = vmatpush1.bf16.msra.mxu0 %v1047
    %1252 = vmatprep.mubr.bf16.mxu0 %v384
    %1253 = vmatmul.mubr.bf16.gmra.mrb[0].mxu0 %v383
    %v1254 = vpop.f32.mrb[0].mxu0
    %v1255 = vadd.f32 %v1214, %v1254
    %v1256 = vpop.f32.mrb[0].mxu0
    %v1257 = vadd.f32 %v1216, %v1256
    %v1258 = vpop.f32.mrb[0].mxu0
    %v1259 = vpop.f32.mrb[0].mxu0
    %1260 = vdwg.mxu0
    %1261 = vmatprep.subr.bf16.mxu0 %v926
    %1262 = vmatpush1.bf16.msra.mxu0 %v925
    %1263 = vmatprep.subr.bf16.mxu0 %v930
    %1264 = vmatpush1.bf16.msra.mxu0 %v929
    %1265 = vmatprep.subr.bf16.mxu0 %v934
    %1266 = vmatpush1.bf16.msra.mxu0 %v933
    %1267 = vmatprep.subr.bf16.mxu0 %v938
    %1268 = vmatpush1.bf16.msra.mxu0 %v937
    %1269 = vmatprep.subr.bf16.mxu0 %v942
    %1270 = vmatpush1.bf16.msra.mxu0 %v941
    %1271 = vmatprep.subr.bf16.mxu0 %v946
    %1272 = vmatpush1.bf16.msra.mxu0 %v945
    %1273 = vmatprep.subr.bf16.mxu0 %v950
    %1274 = vmatpush1.bf16.msra.mxu0 %v949
    %1275 = vmatprep.subr.bf16.mxu0 %v954
    %1276 = vmatpush1.bf16.msra.mxu0 %v953
    %1277 = vmatprep.subr.bf16.mxu0 %v958
    %1278 = vmatpush1.bf16.msra.mxu0 %v957
    %1279 = vmatprep.subr.bf16.mxu0 %v962
    %1280 = vmatpush1.bf16.msra.mxu0 %v961
    %1281 = vmatprep.subr.bf16.mxu0 %v966
    %1282 = vmatpush1.bf16.msra.mxu0 %v965
    %1283 = vmatprep.subr.bf16.mxu0 %v970
    %1284 = vmatpush1.bf16.msra.mxu0 %v969
    %1285 = vmatprep.subr.bf16.mxu0 %v974
    %1286 = vmatpush1.bf16.msra.mxu0 %v973
    %1287 = vmatprep.subr.bf16.mxu0 %v978
    %1288 = vmatpush1.bf16.msra.mxu0 %v977
    %1289 = vmatprep.subr.bf16.mxu0 %v982
    %1290 = vmatpush1.bf16.msra.mxu0 %v981
    %1291 = vmatprep.subr.bf16.mxu0 %v986
    %1292 = vmatpush1.bf16.msra.mxu0 %v985
    %1293 = vmatprep.mubr.bf16.mxu0 %v382
    %1294 = vmatmul.mubr.bf16.gmra.mrb[0].mxu0 %v381
    %v1295 = vpop.f32.mrb[0].mxu0
    %v1296 = vadd.f32 %v530, %v1295
    %v1297 = vpop.f32.mrb[0].mxu0
    %v1298 = vadd.f32 %v534, %v1297
    %v1299 = vpop.f32.mrb[0].mxu0
    %v1300 = vpop.f32.mrb[0].mxu0
    %1301 = vdwg.mxu0
    %1302 = vmatprep.subr.bf16.mxu0 %v990
    %1303 = vmatpush1.bf16.msra.mxu0 %v989
    %1304 = vmatprep.subr.bf16.mxu0 %v994
    %1305 = vmatpush1.bf16.msra.mxu0 %v993
    %1306 = vmatprep.subr.bf16.mxu0 %v998
    %1307 = vmatpush1.bf16.msra.mxu0 %v997
    %1308 = vmatprep.subr.bf16.mxu0 %v1002
    %1309 = vmatpush1.bf16.msra.mxu0 %v1001
    %1310 = vmatprep.subr.bf16.mxu0 %v1006
    %1311 = vmatpush1.bf16.msra.mxu0 %v1005
    %1312 = vmatprep.subr.bf16.mxu0 %v1010
    %1313 = vmatpush1.bf16.msra.mxu0 %v1009
    %1314 = vmatprep.subr.bf16.mxu0 %v1014
    %1315 = vmatpush1.bf16.msra.mxu0 %v1013
    %1316 = vmatprep.subr.bf16.mxu0 %v1018
    %1317 = vmatpush1.bf16.msra.mxu0 %v1017
    %1318 = vmatprep.subr.bf16.mxu0 %v1022
    %1319 = vmatpush1.bf16.msra.mxu0 %v1021
    %1320 = vmatprep.subr.bf16.mxu0 %v1026
    %1321 = vmatpush1.bf16.msra.mxu0 %v1025
    %1322 = vmatprep.subr.bf16.mxu0 %v1030
    %1323 = vmatpush1.bf16.msra.mxu0 %v1029
    %1324 = vmatprep.subr.bf16.mxu0 %v1034
    %1325 = vmatpush1.bf16.msra.mxu0 %v1033
    %1326 = vmatprep.subr.bf16.mxu0 %v1038
    %1327 = vmatpush1.bf16.msra.mxu0 %v1037
    %1328 = vmatprep.subr.bf16.mxu0 %v1042
    %1329 = vmatpush1.bf16.msra.mxu0 %v1041
    %1330 = vmatprep.subr.bf16.mxu0 %v1046
    %1331 = vmatpush1.bf16.msra.mxu0 %v1045
    %1332 = vmatprep.subr.bf16.mxu0 %v1050
    %1333 = vmatpush1.bf16.msra.mxu0 %v1049
    %1334 = vmatprep.mubr.bf16.mxu0 %v384
    %1335 = vmatmul.mubr.bf16.gmra.mrb[0].mxu0 %v383
    %v1336 = vpop.f32.mrb[0].mxu0
    %v1337 = vadd.f32 %v1296, %v1336
    %v1338 = vpop.f32.mrb[0].mxu0
    %v1339 = vadd.f32 %v1298, %v1338
    %v1340 = vpop.f32.mrb[0].mxu0
    %v1341 = vpop.f32.mrb[0].mxu0
    %1342 = vdwg.mxu0
    %v1343 = vld [vmem:[#allocation5] sm:$0xff]
    %v1344 = vld [vmem:[#allocation5 + $0x8] sm:$0xff]
    %v1345 = vld [vmem:[#allocation5 + $0x10] sm:$0xff]
    %v1346 = vld [vmem:[#allocation5 + $0x18] sm:$0xff]
    %v1347 = vld [vmem:[#allocation5 + $0x20] sm:$0xff]
    %v1348 = vld [vmem:[#allocation5 + $0x28] sm:$0xff]
    %v1349 = vld [vmem:[#allocation5 + $0x30] sm:$0xff]
    %v1350 = vld [vmem:[#allocation5 + $0x38] sm:$0xff]
    %v1351 = vld [vmem:[#allocation5 + $0x40] sm:$0xff]
    %v1352 = vld [vmem:[#allocation5 + $0x48] sm:$0xff]
    %v1353 = vld [vmem:[#allocation5 + $0x50] sm:$0xff]
    %v1354 = vld [vmem:[#allocation5 + $0x58] sm:$0xff]
    %v1355 = vld [vmem:[#allocation5 + $0x60] sm:$0xff]
    %v1356 = vld [vmem:[#allocation5 + $0x68] sm:$0xff]
    %v1357 = vld [vmem:[#allocation5 + $0x70] sm:$0xff]
    %v1358 = vld [vmem:[#allocation5 + $0x78] sm:$0xff]
    %v1359 = vld [vmem:[#allocation5 + $0x80] sm:$0xff]
    %v1360 = vld [vmem:[#allocation5 + $0x88] sm:$0xff]
    %v1361 = vld [vmem:[#allocation5 + $0x90] sm:$0xff]
    %v1362 = vld [vmem:[#allocation5 + $0x98] sm:$0xff]
    %v1363 = vld [vmem:[#allocation5 + $0xa0] sm:$0xff]
    %v1364 = vld [vmem:[#allocation5 + $0xa8] sm:$0xff]
    %v1365 = vld [vmem:[#allocation5 + $0xb0] sm:$0xff]
    %v1366 = vld [vmem:[#allocation5 + $0xb8] sm:$0xff]
    %v1367 = vld [vmem:[#allocation5 + $0xc0] sm:$0xff]
    %v1368 = vld [vmem:[#allocation5 + $0xc8] sm:$0xff]
    %v1369 = vld [vmem:[#allocation5 + $0xd0] sm:$0xff]
    %v1370 = vld [vmem:[#allocation5 + $0xd8] sm:$0xff]
    %v1371 = vld [vmem:[#allocation5 + $0xe0] sm:$0xff]
    %v1372 = vld [vmem:[#allocation5 + $0xe8] sm:$0xff]
    %v1373 = vld [vmem:[#allocation5 + $0xf0] sm:$0xff]
    %v1374 = vld [vmem:[#allocation5 + $0xf8] sm:$0xff]
    %v1375 = vld [vmem:[#allocation5 + $0x100] sm:$0xff]
    %v1376 = vld [vmem:[#allocation5 + $0x108] sm:$0xff]
    %v1377 = vld [vmem:[#allocation5 + $0x110] sm:$0xff]
    %v1378 = vld [vmem:[#allocation5 + $0x118] sm:$0xff]
    %v1379 = vld [vmem:[#allocation5 + $0x120] sm:$0xff]
    %v1380 = vld [vmem:[#allocation5 + $0x128] sm:$0xff]
    %v1381 = vld [vmem:[#allocation5 + $0x130] sm:$0xff]
    %v1382 = vld [vmem:[#allocation5 + $0x138] sm:$0xff]
    %v1383 = vld [vmem:[#allocation5 + $0x140] sm:$0xff]
    %v1384 = vld [vmem:[#allocation5 + $0x148] sm:$0xff]
    %v1385 = vld [vmem:[#allocation5 + $0x150] sm:$0xff]
    %v1386 = vld [vmem:[#allocation5 + $0x158] sm:$0xff]
    %v1387 = vld [vmem:[#allocation5 + $0x160] sm:$0xff]
    %v1388 = vld [vmem:[#allocation5 + $0x168] sm:$0xff]
    %v1389 = vld [vmem:[#allocation5 + $0x170] sm:$0xff]
    %v1390 = vld [vmem:[#allocation5 + $0x178] sm:$0xff]
    %v1391 = vld [vmem:[#allocation5 + $0x180] sm:$0xff]
    %v1392 = vld [vmem:[#allocation5 + $0x188] sm:$0xff]
    %v1393 = vld [vmem:[#allocation5 + $0x190] sm:$0xff]
    %v1394 = vld [vmem:[#allocation5 + $0x198] sm:$0xff]
    %v1395 = vld [vmem:[#allocation5 + $0x1a0] sm:$0xff]
    %v1396 = vld [vmem:[#allocation5 + $0x1a8] sm:$0xff]
    %v1397 = vld [vmem:[#allocation5 + $0x1b0] sm:$0xff]
    %v1398 = vld [vmem:[#allocation5 + $0x1b8] sm:$0xff]
    %v1399 = vld [vmem:[#allocation5 + $0x1c0] sm:$0xff]
    %v1400 = vld [vmem:[#allocation5 + $0x1c8] sm:$0xff]
    %v1401 = vld [vmem:[#allocation5 + $0x1d0] sm:$0xff]
    %v1402 = vld [vmem:[#allocation5 + $0x1d8] sm:$0xff]
    %v1403 = vld [vmem:[#allocation5 + $0x1e0] sm:$0xff]
    %v1404 = vld [vmem:[#allocation5 + $0x1e8] sm:$0xff]
    %v1405 = vld [vmem:[#allocation5 + $0x1f0] sm:$0xff]
    %v1406 = vld [vmem:[#allocation5 + $0x1f8] sm:$0xff]
    %v1407 = vld [vmem:[#allocation5 + $0x200] sm:$0xff]
    %v1408 = vld [vmem:[#allocation5 + $0x208] sm:$0xff]
    %v1409 = vld [vmem:[#allocation5 + $0x210] sm:$0xff]
    %v1410 = vld [vmem:[#allocation5 + $0x218] sm:$0xff]
    %v1411 = vld [vmem:[#allocation5 + $0x220] sm:$0xff]
    %v1412 = vld [vmem:[#allocation5 + $0x228] sm:$0xff]
    %v1413 = vld [vmem:[#allocation5 + $0x230] sm:$0xff]
    %v1414 = vld [vmem:[#allocation5 + $0x238] sm:$0xff]
    %v1415 = vld [vmem:[#allocation5 + $0x240] sm:$0xff]
    %v1416 = vld [vmem:[#allocation5 + $0x248] sm:$0xff]
    %v1417 = vld [vmem:[#allocation5 + $0x250] sm:$0xff]
    %v1418 = vld [vmem:[#allocation5 + $0x258] sm:$0xff]
    %v1419 = vld [vmem:[#allocation5 + $0x260] sm:$0xff]
    %v1420 = vld [vmem:[#allocation5 + $0x268] sm:$0xff]
    %v1421 = vld [vmem:[#allocation5 + $0x270] sm:$0xff]
    %v1422 = vld [vmem:[#allocation5 + $0x278] sm:$0xff]
    %v1423 = vld [vmem:[#allocation5 + $0x280] sm:$0xff]
    %v1424 = vld [vmem:[#allocation5 + $0x288] sm:$0xff]
    %v1425 = vld [vmem:[#allocation5 + $0x290] sm:$0xff]
    %v1426 = vld [vmem:[#allocation5 + $0x298] sm:$0xff]
    %v1427 = vld [vmem:[#allocation5 + $0x2a0] sm:$0xff]
    %v1428 = vld [vmem:[#allocation5 + $0x2a8] sm:$0xff]
    %v1429 = vld [vmem:[#allocation5 + $0x2b0] sm:$0xff]
    %v1430 = vld [vmem:[#allocation5 + $0x2b8] sm:$0xff]
    %v1431 = vld [vmem:[#allocation5 + $0x2c0] sm:$0xff]
    %v1432 = vld [vmem:[#allocation5 + $0x2c8] sm:$0xff]
    %v1433 = vld [vmem:[#allocation5 + $0x2d0] sm:$0xff]
    %v1434 = vld [vmem:[#allocation5 + $0x2d8] sm:$0xff]
    %v1435 = vld [vmem:[#allocation5 + $0x2e0] sm:$0xff]
    %v1436 = vld [vmem:[#allocation5 + $0x2e8] sm:$0xff]
    %v1437 = vld [vmem:[#allocation5 + $0x2f0] sm:$0xff]
    %v1438 = vld [vmem:[#allocation5 + $0x2f8] sm:$0xff]
    %v1439 = vld [vmem:[#allocation5 + $0x300] sm:$0xff]
    %v1440 = vld [vmem:[#allocation5 + $0x308] sm:$0xff]
    %v1441 = vld [vmem:[#allocation5 + $0x310] sm:$0xff]
    %v1442 = vld [vmem:[#allocation5 + $0x318] sm:$0xff]
    %v1443 = vld [vmem:[#allocation5 + $0x320] sm:$0xff]
    %v1444 = vld [vmem:[#allocation5 + $0x328] sm:$0xff]
    %v1445 = vld [vmem:[#allocation5 + $0x330] sm:$0xff]
    %v1446 = vld [vmem:[#allocation5 + $0x338] sm:$0xff]
    %v1447 = vld [vmem:[#allocation5 + $0x340] sm:$0xff]
    %v1448 = vld [vmem:[#allocation5 + $0x348] sm:$0xff]
    %v1449 = vld [vmem:[#allocation5 + $0x350] sm:$0xff]
    %v1450 = vld [vmem:[#allocation5 + $0x358] sm:$0xff]
    %v1451 = vld [vmem:[#allocation5 + $0x360] sm:$0xff]
    %v1452 = vld [vmem:[#allocation5 + $0x368] sm:$0xff]
    %v1453 = vld [vmem:[#allocation5 + $0x370] sm:$0xff]
    %v1454 = vld [vmem:[#allocation5 + $0x378] sm:$0xff]
    %v1455 = vld [vmem:[#allocation5 + $0x380] sm:$0xff]
    %v1456 = vld [vmem:[#allocation5 + $0x388] sm:$0xff]
    %v1457 = vld [vmem:[#allocation5 + $0x390] sm:$0xff]
    %v1458 = vld [vmem:[#allocation5 + $0x398] sm:$0xff]
    %v1459 = vld [vmem:[#allocation5 + $0x3a0] sm:$0xff]
    %v1460 = vld [vmem:[#allocation5 + $0x3a8] sm:$0xff]
    %v1461 = vld [vmem:[#allocation5 + $0x3b0] sm:$0xff]
    %v1462 = vld [vmem:[#allocation5 + $0x3b8] sm:$0xff]
    %v1463 = vld [vmem:[#allocation5 + $0x3c0] sm:$0xff]
    %v1464 = vld [vmem:[#allocation5 + $0x3c8] sm:$0xff]
    %v1465 = vld [vmem:[#allocation5 + $0x3d0] sm:$0xff]
    %v1466 = vld [vmem:[#allocation5 + $0x3d8] sm:$0xff]
    %v1467 = vld [vmem:[#allocation5 + $0x3e0] sm:$0xff]
    %v1468 = vld [vmem:[#allocation5 + $0x3e8] sm:$0xff]
    %v1469 = vld [vmem:[#allocation5 + $0x3f0] sm:$0xff]
    %v1470 = vld [vmem:[#allocation5 + $0x3f8] sm:$0xff]
    %v1471 = vld [vmem:[%s6] sm:$0xf]
    %v1473 = vlaneseq
    %v1474 = vshrl.u32 %v1473, 7
    %v1475 = vsub.s32 0, %v1474
    %v1476 = vrot.slane %v1471, %v1475
    %v1477 = vlaneseq
    %v1478 = vshrl.u32 %v1477, 7
    %v1479 = vsub.s32 1, %v1478
    %v1480 = vrot.slane %v1471, %v1479
    %v1481 = vlaneseq
    %v1482 = vshrl.u32 %v1481, 7
    %v1483 = vsub.s32 2, %v1482
    %v1484 = vrot.slane %v1471, %v1483
    %v1485 = vlaneseq
    %v1486 = vshrl.u32 %v1485, 7
    %v1487 = vsub.s32 3, %v1486
    %v1488 = vrot.slane %v1471, %v1487
    %v1621 = vunpack.c.l.b16 %v1343
    %v1622 = vunpack.c.h.b16 %v1343
    %v1623 = vunpack.c.l.b16 %v1344
    %v1624 = vunpack.c.h.b16 %v1344
    %v1625 = vunpack.c.l.b16 %v1345
    %v1626 = vunpack.c.h.b16 %v1345
    %v1627 = vunpack.c.l.b16 %v1346
    %v1628 = vunpack.c.h.b16 %v1346
    %v1629 = vunpack.c.l.b16 %v1347
    %v1630 = vunpack.c.h.b16 %v1347
    %v1631 = vunpack.c.l.b16 %v1348
    %v1632 = vunpack.c.h.b16 %v1348
    %v1633 = vunpack.c.l.b16 %v1349
    %v1634 = vunpack.c.h.b16 %v1349
    %v1635 = vunpack.c.l.b16 %v1350
    %v1636 = vunpack.c.h.b16 %v1350
    %v1637 = vunpack.c.l.b16 %v1351
    %v1638 = vunpack.c.h.b16 %v1351
    %v1639 = vunpack.c.l.b16 %v1352
    %v1640 = vunpack.c.h.b16 %v1352
    %v1641 = vunpack.c.l.b16 %v1353
    %v1642 = vunpack.c.h.b16 %v1353
    %v1643 = vunpack.c.l.b16 %v1354
    %v1644 = vunpack.c.h.b16 %v1354
    %v1645 = vunpack.c.l.b16 %v1355
    %v1646 = vunpack.c.h.b16 %v1355
    %v1647 = vunpack.c.l.b16 %v1356
    %v1648 = vunpack.c.h.b16 %v1356
    %v1649 = vunpack.c.l.b16 %v1357
    %v1650 = vunpack.c.h.b16 %v1357
    %v1651 = vunpack.c.l.b16 %v1358
    %v1652 = vunpack.c.h.b16 %v1358
    %v1653 = vunpack.c.l.b16 %v1359
    %v1654 = vunpack.c.h.b16 %v1359
    %v1655 = vunpack.c.l.b16 %v1360
    %v1656 = vunpack.c.h.b16 %v1360
    %v1657 = vunpack.c.l.b16 %v1361
    %v1658 = vunpack.c.h.b16 %v1361
    %v1659 = vunpack.c.l.b16 %v1362
    %v1660 = vunpack.c.h.b16 %v1362
    %v1661 = vunpack.c.l.b16 %v1363
    %v1662 = vunpack.c.h.b16 %v1363
    %v1663 = vunpack.c.l.b16 %v1364
    %v1664 = vunpack.c.h.b16 %v1364
    %v1665 = vunpack.c.l.b16 %v1365
    %v1666 = vunpack.c.h.b16 %v1365
    %v1667 = vunpack.c.l.b16 %v1366
    %v1668 = vunpack.c.h.b16 %v1366
    %v1669 = vunpack.c.l.b16 %v1367
    %v1670 = vunpack.c.h.b16 %v1367
    %v1671 = vunpack.c.l.b16 %v1368
    %v1672 = vunpack.c.h.b16 %v1368
    %v1673 = vunpack.c.l.b16 %v1369
    %v1674 = vunpack.c.h.b16 %v1369
    %v1675 = vunpack.c.l.b16 %v1370
    %v1676 = vunpack.c.h.b16 %v1370
    %v1677 = vunpack.c.l.b16 %v1371
    %v1678 = vunpack.c.h.b16 %v1371
    %v1679 = vunpack.c.l.b16 %v1372
    %v1680 = vunpack.c.h.b16 %v1372
    %v1681 = vunpack.c.l.b16 %v1373
    %v1682 = vunpack.c.h.b16 %v1373
    %v1683 = vunpack.c.l.b16 %v1374
    %v1684 = vunpack.c.h.b16 %v1374
    %v1685 = vunpack.c.l.b16 %v1375
    %v1686 = vunpack.c.h.b16 %v1375
    %v1687 = vunpack.c.l.b16 %v1376
    %v1688 = vunpack.c.h.b16 %v1376
    %v1689 = vunpack.c.l.b16 %v1377
    %v1690 = vunpack.c.h.b16 %v1377
    %v1691 = vunpack.c.l.b16 %v1378
    %v1692 = vunpack.c.h.b16 %v1378
    %v1693 = vunpack.c.l.b16 %v1379
    %v1694 = vunpack.c.h.b16 %v1379
    %v1695 = vunpack.c.l.b16 %v1380
    %v1696 = vunpack.c.h.b16 %v1380
    %v1697 = vunpack.c.l.b16 %v1381
    %v1698 = vunpack.c.h.b16 %v1381
    %v1699 = vunpack.c.l.b16 %v1382
    %v1700 = vunpack.c.h.b16 %v1382
    %v1701 = vunpack.c.l.b16 %v1383
    %v1702 = vunpack.c.h.b16 %v1383
    %v1703 = vunpack.c.l.b16 %v1384
    %v1704 = vunpack.c.h.b16 %v1384
    %v1705 = vunpack.c.l.b16 %v1385
    %v1706 = vunpack.c.h.b16 %v1385
    %v1707 = vunpack.c.l.b16 %v1386
    %v1708 = vunpack.c.h.b16 %v1386
    %v1709 = vunpack.c.l.b16 %v1387
    %v1710 = vunpack.c.h.b16 %v1387
    %v1711 = vunpack.c.l.b16 %v1388
    %v1712 = vunpack.c.h.b16 %v1388
    %v1713 = vunpack.c.l.b16 %v1389
    %v1714 = vunpack.c.h.b16 %v1389
    %v1715 = vunpack.c.l.b16 %v1390
    %v1716 = vunpack.c.h.b16 %v1390
    %v1717 = vunpack.c.l.b16 %v1391
    %v1718 = vunpack.c.h.b16 %v1391
    %v1719 = vunpack.c.l.b16 %v1392
    %v1720 = vunpack.c.h.b16 %v1392
    %v1721 = vunpack.c.l.b16 %v1393
    %v1722 = vunpack.c.h.b16 %v1393
    %v1723 = vunpack.c.l.b16 %v1394
    %v1724 = vunpack.c.h.b16 %v1394
    %v1725 = vunpack.c.l.b16 %v1395
    %v1726 = vunpack.c.h.b16 %v1395
    %v1727 = vunpack.c.l.b16 %v1396
    %v1728 = vunpack.c.h.b16 %v1396
    %v1729 = vunpack.c.l.b16 %v1397
    %v1730 = vunpack.c.h.b16 %v1397
    %v1731 = vunpack.c.l.b16 %v1398
    %v1732 = vunpack.c.h.b16 %v1398
    %v1733 = vunpack.c.l.b16 %v1399
    %v1734 = vunpack.c.h.b16 %v1399
    %v1735 = vunpack.c.l.b16 %v1400
    %v1736 = vunpack.c.h.b16 %v1400
    %v1737 = vunpack.c.l.b16 %v1401
    %v1738 = vunpack.c.h.b16 %v1401
    %v1739 = vunpack.c.l.b16 %v1402
    %v1740 = vunpack.c.h.b16 %v1402
    %v1741 = vunpack.c.l.b16 %v1403
    %v1742 = vunpack.c.h.b16 %v1403
    %v1743 = vunpack.c.l.b16 %v1404
    %v1744 = vunpack.c.h.b16 %v1404
    %v1745 = vunpack.c.l.b16 %v1405
    %v1746 = vunpack.c.h.b16 %v1405
    %v1747 = vunpack.c.l.b16 %v1406
    %v1748 = vunpack.c.h.b16 %v1406
    %v1749 = vunpack.c.l.b16 %v1407
    %v1750 = vunpack.c.h.b16 %v1407
    %v1751 = vunpack.c.l.b16 %v1408
    %v1752 = vunpack.c.h.b16 %v1408
    %v1753 = vunpack.c.l.b16 %v1409
    %v1754 = vunpack.c.h.b16 %v1409
    %v1755 = vunpack.c.l.b16 %v1410
    %v1756 = vunpack.c.h.b16 %v1410
    %v1757 = vunpack.c.l.b16 %v1411
    %v1758 = vunpack.c.h.b16 %v1411
    %v1759 = vunpack.c.l.b16 %v1412
    %v1760 = vunpack.c.h.b16 %v1412
    %v1761 = vunpack.c.l.b16 %v1413
    %v1762 = vunpack.c.h.b16 %v1413
    %v1763 = vunpack.c.l.b16 %v1414
    %v1764 = vunpack.c.h.b16 %v1414
    %v1765 = vunpack.c.l.b16 %v1415
    %v1766 = vunpack.c.h.b16 %v1415
    %v1767 = vunpack.c.l.b16 %v1416
    %v1768 = vunpack.c.h.b16 %v1416
    %v1769 = vunpack.c.l.b16 %v1417
    %v1770 = vunpack.c.h.b16 %v1417
    %v1771 = vunpack.c.l.b16 %v1418
    %v1772 = vunpack.c.h.b16 %v1418
    %v1773 = vunpack.c.l.b16 %v1419
    %v1774 = vunpack.c.h.b16 %v1419
    %v1775 = vunpack.c.l.b16 %v1420
    %v1776 = vunpack.c.h.b16 %v1420
    %v1777 = vunpack.c.l.b16 %v1421
    %v1778 = vunpack.c.h.b16 %v1421
    %v1779 = vunpack.c.l.b16 %v1422
    %v1780 = vunpack.c.h.b16 %v1422
    %v1781 = vunpack.c.l.b16 %v1423
    %v1782 = vunpack.c.h.b16 %v1423
    %v1783 = vunpack.c.l.b16 %v1424
    %v1784 = vunpack.c.h.b16 %v1424
    %v1785 = vunpack.c.l.b16 %v1425
    %v1786 = vunpack.c.h.b16 %v1425
    %v1787 = vunpack.c.l.b16 %v1426
    %v1788 = vunpack.c.h.b16 %v1426
    %v1789 = vunpack.c.l.b16 %v1427
    %v1790 = vunpack.c.h.b16 %v1427
    %v1791 = vunpack.c.l.b16 %v1428
    %v1792 = vunpack.c.h.b16 %v1428
    %v1793 = vunpack.c.l.b16 %v1429
    %v1794 = vunpack.c.h.b16 %v1429
    %v1795 = vunpack.c.l.b16 %v1430
    %v1796 = vunpack.c.h.b16 %v1430
    %v1797 = vunpack.c.l.b16 %v1431
    %v1798 = vunpack.c.h.b16 %v1431
    %v1799 = vunpack.c.l.b16 %v1432
    %v1800 = vunpack.c.h.b16 %v1432
    %v1801 = vunpack.c.l.b16 %v1433
    %v1802 = vunpack.c.h.b16 %v1433
    %v1803 = vunpack.c.l.b16 %v1434
    %v1804 = vunpack.c.h.b16 %v1434
    %v1805 = vunpack.c.l.b16 %v1435
    %v1806 = vunpack.c.h.b16 %v1435
    %v1807 = vunpack.c.l.b16 %v1436
    %v1808 = vunpack.c.h.b16 %v1436
    %v1809 = vunpack.c.l.b16 %v1437
    %v1810 = vunpack.c.h.b16 %v1437
    %v1811 = vunpack.c.l.b16 %v1438
    %v1812 = vunpack.c.h.b16 %v1438
    %v1813 = vunpack.c.l.b16 %v1439
    %v1814 = vunpack.c.h.b16 %v1439
    %v1815 = vunpack.c.l.b16 %v1440
    %v1816 = vunpack.c.h.b16 %v1440
    %v1817 = vunpack.c.l.b16 %v1441
    %v1818 = vunpack.c.h.b16 %v1441
    %v1819 = vunpack.c.l.b16 %v1442
    %v1820 = vunpack.c.h.b16 %v1442
    %v1821 = vunpack.c.l.b16 %v1443
    %v1822 = vunpack.c.h.b16 %v1443
    %v1823 = vunpack.c.l.b16 %v1444
    %v1824 = vunpack.c.h.b16 %v1444
    %v1825 = vunpack.c.l.b16 %v1445
    %v1826 = vunpack.c.h.b16 %v1445
    %v1827 = vunpack.c.l.b16 %v1446
    %v1828 = vunpack.c.h.b16 %v1446
    %v1829 = vunpack.c.l.b16 %v1447
    %v1830 = vunpack.c.h.b16 %v1447
    %v1831 = vunpack.c.l.b16 %v1448
    %v1832 = vunpack.c.h.b16 %v1448
    %v1833 = vunpack.c.l.b16 %v1449
    %v1834 = vunpack.c.h.b16 %v1449
    %v1835 = vunpack.c.l.b16 %v1450
    %v1836 = vunpack.c.h.b16 %v1450
    %v1837 = vunpack.c.l.b16 %v1451
    %v1838 = vunpack.c.h.b16 %v1451
    %v1839 = vunpack.c.l.b16 %v1452
    %v1840 = vunpack.c.h.b16 %v1452
    %v1841 = vunpack.c.l.b16 %v1453
    %v1842 = vunpack.c.h.b16 %v1453
    %v1843 = vunpack.c.l.b16 %v1454
    %v1844 = vunpack.c.h.b16 %v1454
    %v1845 = vunpack.c.l.b16 %v1455
    %v1846 = vunpack.c.h.b16 %v1455
    %v1847 = vunpack.c.l.b16 %v1456
    %v1848 = vunpack.c.h.b16 %v1456
    %v1849 = vunpack.c.l.b16 %v1457
    %v1850 = vunpack.c.h.b16 %v1457
    %v1851 = vunpack.c.l.b16 %v1458
    %v1852 = vunpack.c.h.b16 %v1458
    %v1853 = vunpack.c.l.b16 %v1459
    %v1854 = vunpack.c.h.b16 %v1459
    %v1855 = vunpack.c.l.b16 %v1460
    %v1856 = vunpack.c.h.b16 %v1460
    %v1857 = vunpack.c.l.b16 %v1461
    %v1858 = vunpack.c.h.b16 %v1461
    %v1859 = vunpack.c.l.b16 %v1462
    %v1860 = vunpack.c.h.b16 %v1462
    %v1861 = vunpack.c.l.b16 %v1463
    %v1862 = vunpack.c.h.b16 %v1463
    %v1863 = vunpack.c.l.b16 %v1464
    %v1864 = vunpack.c.h.b16 %v1464
    %v1865 = vunpack.c.l.b16 %v1465
    %v1866 = vunpack.c.h.b16 %v1465
    %v1867 = vunpack.c.l.b16 %v1466
    %v1868 = vunpack.c.h.b16 %v1466
    %v1869 = vunpack.c.l.b16 %v1467
    %v1870 = vunpack.c.h.b16 %v1467
    %v1871 = vunpack.c.l.b16 %v1468
    %v1872 = vunpack.c.h.b16 %v1468
    %v1873 = vunpack.c.l.b16 %v1469
    %v1874 = vunpack.c.h.b16 %v1469
    %v1875 = vunpack.c.l.b16 %v1470
    %v1876 = vunpack.c.h.b16 %v1470
    %v1877 = vpack.c.b16 %v1625, %v1621
    %v1878 = vpack.c.b16 %v1626, %v1622
    %v1879 = vpack.c.b16 %v1627, %v1623
    %v1880 = vpack.c.b16 %v1628, %v1624
    %v1881 = vpack.c.b16 %v1633, %v1629
    %v1882 = vpack.c.b16 %v1634, %v1630
    %v1883 = vpack.c.b16 %v1635, %v1631
    %v1884 = vpack.c.b16 %v1636, %v1632
    %v1885 = vpack.c.b16 %v1641, %v1637
    %v1886 = vpack.c.b16 %v1642, %v1638
    %v1887 = vpack.c.b16 %v1643, %v1639
    %v1888 = vpack.c.b16 %v1644, %v1640
    %v1889 = vpack.c.b16 %v1649, %v1645
    %v1890 = vpack.c.b16 %v1650, %v1646
    %v1891 = vpack.c.b16 %v1651, %v1647
    %v1892 = vpack.c.b16 %v1652, %v1648
    %v1893 = vpack.c.b16 %v1657, %v1653
    %v1894 = vpack.c.b16 %v1658, %v1654
    %v1895 = vpack.c.b16 %v1659, %v1655
    %v1896 = vpack.c.b16 %v1660, %v1656
    %v1897 = vpack.c.b16 %v1665, %v1661
    %v1898 = vpack.c.b16 %v1666, %v1662
    %v1899 = vpack.c.b16 %v1667, %v1663
    %v1900 = vpack.c.b16 %v1668, %v1664
    %v1901 = vpack.c.b16 %v1673, %v1669
    %v1902 = vpack.c.b16 %v1674, %v1670
    %v1903 = vpack.c.b16 %v1675, %v1671
    %v1904 = vpack.c.b16 %v1676, %v1672
    %v1905 = vpack.c.b16 %v1681, %v1677
    %v1906 = vpack.c.b16 %v1682, %v1678
    %v1907 = vpack.c.b16 %v1683, %v1679
    %v1908 = vpack.c.b16 %v1684, %v1680
    %v1909 = vpack.c.b16 %v1689, %v1685
    %v1910 = vpack.c.b16 %v1690, %v1686
    %v1911 = vpack.c.b16 %v1691, %v1687
    %v1912 = vpack.c.b16 %v1692, %v1688
    %v1913 = vpack.c.b16 %v1697, %v1693
    %v1914 = vpack.c.b16 %v1698, %v1694
    %v1915 = vpack.c.b16 %v1699, %v1695
    %v1916 = vpack.c.b16 %v1700, %v1696
    %v1917 = vpack.c.b16 %v1705, %v1701
    %v1918 = vpack.c.b16 %v1706, %v1702
    %v1919 = vpack.c.b16 %v1707, %v1703
    %v1920 = vpack.c.b16 %v1708, %v1704
    %v1921 = vpack.c.b16 %v1713, %v1709
    %v1922 = vpack.c.b16 %v1714, %v1710
    %v1923 = vpack.c.b16 %v1715, %v1711
    %v1924 = vpack.c.b16 %v1716, %v1712
    %v1925 = vpack.c.b16 %v1721, %v1717
    %v1926 = vpack.c.b16 %v1722, %v1718
    %v1927 = vpack.c.b16 %v1723, %v1719
    %v1928 = vpack.c.b16 %v1724, %v1720
    %v1929 = vpack.c.b16 %v1729, %v1725
    %v1930 = vpack.c.b16 %v1730, %v1726
    %v1931 = vpack.c.b16 %v1731, %v1727
    %v1932 = vpack.c.b16 %v1732, %v1728
    %v1933 = vpack.c.b16 %v1737, %v1733
    %v1934 = vpack.c.b16 %v1738, %v1734
    %v1935 = vpack.c.b16 %v1739, %v1735
    %v1936 = vpack.c.b16 %v1740, %v1736
    %v1937 = vpack.c.b16 %v1745, %v1741
    %v1938 = vpack.c.b16 %v1746, %v1742
    %v1939 = vpack.c.b16 %v1747, %v1743
    %v1940 = vpack.c.b16 %v1748, %v1744
    %v1941 = vpack.c.b16 %v1753, %v1749
    %v1942 = vpack.c.b16 %v1754, %v1750
    %v1943 = vpack.c.b16 %v1755, %v1751
    %v1944 = vpack.c.b16 %v1756, %v1752
    %v1945 = vpack.c.b16 %v1761, %v1757
    %v1946 = vpack.c.b16 %v1762, %v1758
    %v1947 = vpack.c.b16 %v1763, %v1759
    %v1948 = vpack.c.b16 %v1764, %v1760
    %v1949 = vpack.c.b16 %v1769, %v1765
    %v1950 = vpack.c.b16 %v1770, %v1766
    %v1951 = vpack.c.b16 %v1771, %v1767
    %v1952 = vpack.c.b16 %v1772, %v1768
    %v1953 = vpack.c.b16 %v1777, %v1773
    %v1954 = vpack.c.b16 %v1778, %v1774
    %v1955 = vpack.c.b16 %v1779, %v1775
    %v1956 = vpack.c.b16 %v1780, %v1776
    %v1957 = vpack.c.b16 %v1785, %v1781
    %v1958 = vpack.c.b16 %v1786, %v1782
    %v1959 = vpack.c.b16 %v1787, %v1783
    %v1960 = vpack.c.b16 %v1788, %v1784
    %v1961 = vpack.c.b16 %v1793, %v1789
    %v1962 = vpack.c.b16 %v1794, %v1790
    %v1963 = vpack.c.b16 %v1795, %v1791
    %v1964 = vpack.c.b16 %v1796, %v1792
    %v1965 = vpack.c.b16 %v1801, %v1797
    %v1966 = vpack.c.b16 %v1802, %v1798
    %v1967 = vpack.c.b16 %v1803, %v1799
    %v1968 = vpack.c.b16 %v1804, %v1800
    %v1969 = vpack.c.b16 %v1809, %v1805
    %v1970 = vpack.c.b16 %v1810, %v1806
    %v1971 = vpack.c.b16 %v1811, %v1807
    %v1972 = vpack.c.b16 %v1812, %v1808
    %v1973 = vpack.c.b16 %v1817, %v1813
    %v1974 = vpack.c.b16 %v1818, %v1814
    %v1975 = vpack.c.b16 %v1819, %v1815
    %v1976 = vpack.c.b16 %v1820, %v1816
    %v1977 = vpack.c.b16 %v1825, %v1821
    %v1978 = vpack.c.b16 %v1826, %v1822
    %v1979 = vpack.c.b16 %v1827, %v1823
    %v1980 = vpack.c.b16 %v1828, %v1824
    %v1981 = vpack.c.b16 %v1833, %v1829
    %v1982 = vpack.c.b16 %v1834, %v1830
    %v1983 = vpack.c.b16 %v1835, %v1831
    %v1984 = vpack.c.b16 %v1836, %v1832
    %v1985 = vpack.c.b16 %v1841, %v1837
    %v1986 = vpack.c.b16 %v1842, %v1838
    %v1987 = vpack.c.b16 %v1843, %v1839
    %v1988 = vpack.c.b16 %v1844, %v1840
    %v1989 = vpack.c.b16 %v1849, %v1845
    %v1990 = vpack.c.b16 %v1850, %v1846
    %v1991 = vpack.c.b16 %v1851, %v1847
    %v1992 = vpack.c.b16 %v1852, %v1848
    %v1993 = vpack.c.b16 %v1857, %v1853
    %v1994 = vpack.c.b16 %v1858, %v1854
    %v1995 = vpack.c.b16 %v1859, %v1855
    %v1996 = vpack.c.b16 %v1860, %v1856
    %v1997 = vpack.c.b16 %v1865, %v1861
    %v1998 = vpack.c.b16 %v1866, %v1862
    %v1999 = vpack.c.b16 %v1867, %v1863
    %v2000 = vpack.c.b16 %v1868, %v1864
    %v2001 = vpack.c.b16 %v1873, %v1869
    %v2002 = vpack.c.b16 %v1874, %v1870
    %v2003 = vpack.c.b16 %v1875, %v1871
    %v2004 = vpack.c.b16 %v1876, %v1872
    %2133 = vmatprep.subr.bf16.mxu0 %v1878
    %2134 = vmatpush1.bf16.msra.mxu0 %v1877
    %2135 = vmatprep.subr.bf16.mxu0 %v1882
    %2136 = vmatpush1.bf16.msra.mxu0 %v1881
    %2137 = vmatprep.subr.bf16.mxu0 %v1886
    %2138 = vmatpush1.bf16.msra.mxu0 %v1885
    %2139 = vmatprep.subr.bf16.mxu0 %v1890
    %2140 = vmatpush1.bf16.msra.mxu0 %v1889
    %2141 = vmatprep.subr.bf16.mxu0 %v1894
    %2142 = vmatpush1.bf16.msra.mxu0 %v1893
    %2143 = vmatprep.subr.bf16.mxu0 %v1898
    %2144 = vmatpush1.bf16.msra.mxu0 %v1897
    %2145 = vmatprep.subr.bf16.mxu0 %v1902
    %2146 = vmatpush1.bf16.msra.mxu0 %v1901
    %2147 = vmatprep.subr.bf16.mxu0 %v1906
    %2148 = vmatpush1.bf16.msra.mxu0 %v1905
    %2149 = vmatprep.subr.bf16.mxu0 %v1910
    %2150 = vmatpush1.bf16.msra.mxu0 %v1909
    %2151 = vmatprep.subr.bf16.mxu0 %v1914
    %2152 = vmatpush1.bf16.msra.mxu0 %v1913
    %2153 = vmatprep.subr.bf16.mxu0 %v1918
    %2154 = vmatpush1.bf16.msra.mxu0 %v1917
    %2155 = vmatprep.subr.bf16.mxu0 %v1922
    %2156 = vmatpush1.bf16.msra.mxu0 %v1921
    %2157 = vmatprep.subr.bf16.mxu0 %v1926
    %2158 = vmatpush1.bf16.msra.mxu0 %v1925
    %2159 = vmatprep.subr.bf16.mxu0 %v1930
    %2160 = vmatpush1.bf16.msra.mxu0 %v1929
    %2161 = vmatprep.subr.bf16.mxu0 %v1934
    %2162 = vmatpush1.bf16.msra.mxu0 %v1933
    %2163 = vmatprep.subr.bf16.mxu0 %v1938
    %2164 = vmatpush1.bf16.msra.mxu0 %v1937
    %2165 = vmatprep.mubr.bf16.mxu0 %v386
    %2166 = vmatmul.mubr.bf16.gmra.mrb[0].mxu0 %v385
    %v2167 = vpop.f32.mrb[0].mxu0
    %v2168 = vadd.f32 %v1476, %v2167
    %v2169 = vpop.f32.mrb[0].mxu0
    %v2170 = vadd.f32 %v1480, %v2169
    %v2171 = vpop.f32.mrb[0].mxu0
    %v2172 = vpop.f32.mrb[0].mxu0
    %2173 = vdwg.mxu0
    %2174 = vmatprep.subr.bf16.mxu0 %v1942
    %2175 = vmatpush1.bf16.msra.mxu0 %v1941
    %2176 = vmatprep.subr.bf16.mxu0 %v1946
    %2177 = vmatpush1.bf16.msra.mxu0 %v1945
    %2178 = vmatprep.subr.bf16.mxu0 %v1950
    %2179 = vmatpush1.bf16.msra.mxu0 %v1949
    %2180 = vmatprep.subr.bf16.mxu0 %v1954
    %2181 = vmatpush1.bf16.msra.mxu0 %v1953
    %2182 = vmatprep.subr.bf16.mxu0 %v1958
    %2183 = vmatpush1.bf16.msra.mxu0 %v1957
    %2184 = vmatprep.subr.bf16.mxu0 %v1962
    %2185 = vmatpush1.bf16.msra.mxu0 %v1961
    %2186 = vmatprep.subr.bf16.mxu0 %v1966
    %2187 = vmatpush1.bf16.msra.mxu0 %v1965
    %2188 = vmatprep.subr.bf16.mxu0 %v1970
    %2189 = vmatpush1.bf16.msra.mxu0 %v1969
    %2190 = vmatprep.subr.bf16.mxu0 %v1974
    %2191 = vmatpush1.bf16.msra.mxu0 %v1973
    %2192 = vmatprep.subr.bf16.mxu0 %v1978
    %2193 = vmatpush1.bf16.msra.mxu0 %v1977
    %2194 = vmatprep.subr.bf16.mxu0 %v1982
    %2195 = vmatpush1.bf16.msra.mxu0 %v1981
    %2196 = vmatprep.subr.bf16.mxu0 %v1986
    %2197 = vmatpush1.bf16.msra.mxu0 %v1985
    %2198 = vmatprep.subr.bf16.mxu0 %v1990
    %2199 = vmatpush1.bf16.msra.mxu0 %v1989
    %2200 = vmatprep.subr.bf16.mxu0 %v1994
    %2201 = vmatpush1.bf16.msra.mxu0 %v1993
    %2202 = vmatprep.subr.bf16.mxu0 %v1998
    %2203 = vmatpush1.bf16.msra.mxu0 %v1997
    %2204 = vmatprep.subr.bf16.mxu0 %v2002
    %2205 = vmatpush1.bf16.msra.mxu0 %v2001
    %2206 = vmatprep.mubr.bf16.mxu0 %v388
    %2207 = vmatmul.mubr.bf16.gmra.mrb[0].mxu0 %v387
    %v2208 = vpop.f32.mrb[0].mxu0
    %v2209 = vadd.f32 %v2168, %v2208
    %v2210 = vpop.f32.mrb[0].mxu0
    %v2211 = vadd.f32 %v2170, %v2210
    %v2212 = vpop.f32.mrb[0].mxu0
    %v2213 = vpop.f32.mrb[0].mxu0
    %2214 = vdwg.mxu0
    %2215 = vmatprep.subr.bf16.mxu0 %v1880
    %2216 = vmatpush1.bf16.msra.mxu0 %v1879
    %2217 = vmatprep.subr.bf16.mxu0 %v1884
    %2218 = vmatpush1.bf16.msra.mxu0 %v1883
    %2219 = vmatprep.subr.bf16.mxu0 %v1888
    %2220 = vmatpush1.bf16.msra.mxu0 %v1887
    %2221 = vmatprep.subr.bf16.mxu0 %v1892
    %2222 = vmatpush1.bf16.msra.mxu0 %v1891
    %2223 = vmatprep.subr.bf16.mxu0 %v1896
    %2224 = vmatpush1.bf16.msra.mxu0 %v1895
    %2225 = vmatprep.subr.bf16.mxu0 %v1900
    %2226 = vmatpush1.bf16.msra.mxu0 %v1899
    %2227 = vmatprep.subr.bf16.mxu0 %v1904
    %2228 = vmatpush1.bf16.msra.mxu0 %v1903
    %2229 = vmatprep.subr.bf16.mxu0 %v1908
    %2230 = vmatpush1.bf16.msra.mxu0 %v1907
    %2231 = vmatprep.subr.bf16.mxu0 %v1912
    %2232 = vmatpush1.bf16.msra.mxu0 %v1911
    %2233 = vmatprep.subr.bf16.mxu0 %v1916
    %2234 = vmatpush1.bf16.msra.mxu0 %v1915
    %2235 = vmatprep.subr.bf16.mxu0 %v1920
    %2236 = vmatpush1.bf16.msra.mxu0 %v1919
    %2237 = vmatprep.subr.bf16.mxu0 %v1924
    %2238 = vmatpush1.bf16.msra.mxu0 %v1923
    %2239 = vmatprep.subr.bf16.mxu0 %v1928
    %2240 = vmatpush1.bf16.msra.mxu0 %v1927
    %2241 = vmatprep.subr.bf16.mxu0 %v1932
    %2242 = vmatpush1.bf16.msra.mxu0 %v1931
    %2243 = vmatprep.subr.bf16.mxu0 %v1936
    %2244 = vmatpush1.bf16.msra.mxu0 %v1935
    %2245 = vmatprep.subr.bf16.mxu0 %v1940
    %2246 = vmatpush1.bf16.msra.mxu0 %v1939
    %2247 = vmatprep.mubr.bf16.mxu0 %v386
    %2248 = vmatmul.mubr.bf16.gmra.mrb[0].mxu0 %v385
    %v2249 = vpop.f32.mrb[0].mxu0
    %v2250 = vadd.f32 %v1484, %v2249
    %v2251 = vpop.f32.mrb[0].mxu0
    %v2252 = vadd.f32 %v1488, %v2251
    %v2253 = vpop.f32.mrb[0].mxu0
    %v2254 = vpop.f32.mrb[0].mxu0
    %2255 = vdwg.mxu0
    %2256 = vmatprep.subr.bf16.mxu0 %v1944
    %2257 = vmatpush1.bf16.msra.mxu0 %v1943
    %2258 = vmatprep.subr.bf16.mxu0 %v1948
    %2259 = vmatpush1.bf16.msra.mxu0 %v1947
    %2260 = vmatprep.subr.bf16.mxu0 %v1952
    %2261 = vmatpush1.bf16.msra.mxu0 %v1951
    %2262 = vmatprep.subr.bf16.mxu0 %v1956
    %2263 = vmatpush1.bf16.msra.mxu0 %v1955
    %2264 = vmatprep.subr.bf16.mxu0 %v1960
    %2265 = vmatpush1.bf16.msra.mxu0 %v1959
    %2266 = vmatprep.subr.bf16.mxu0 %v1964
    %2267 = vmatpush1.bf16.msra.mxu0 %v1963
    %2268 = vmatprep.subr.bf16.mxu0 %v1968
    %2269 = vmatpush1.bf16.msra.mxu0 %v1967
    %2270 = vmatprep.subr.bf16.mxu0 %v1972
    %2271 = vmatpush1.bf16.msra.mxu0 %v1971
    %2272 = vmatprep.subr.bf16.mxu0 %v1976
    %2273 = vmatpush1.bf16.msra.mxu0 %v1975
    %2274 = vmatprep.subr.bf16.mxu0 %v1980
    %2275 = vmatpush1.bf16.msra.mxu0 %v1979
    %2276 = vmatprep.subr.bf16.mxu0 %v1984
    %2277 = vmatpush1.bf16.msra.mxu0 %v1983
    %2278 = vmatprep.subr.bf16.mxu0 %v1988
    %2279 = vmatpush1.bf16.msra.mxu0 %v1987
    %2280 = vmatprep.subr.bf16.mxu0 %v1992
    %2281 = vmatpush1.bf16.msra.mxu0 %v1991
    %2282 = vmatprep.subr.bf16.mxu0 %v1996
    %2283 = vmatpush1.bf16.msra.mxu0 %v1995
    %2284 = vmatprep.subr.bf16.mxu0 %v2000
    %2285 = vmatpush1.bf16.msra.mxu0 %v1999
    %2286 = vmatprep.subr.bf16.mxu0 %v2004
    %2287 = vmatpush1.bf16.msra.mxu0 %v2003
    %2288 = vmatprep.mubr.bf16.mxu0 %v388
    %2289 = vmatmul.mubr.bf16.gmra.mrb[0].mxu0 %v387
    %v2290 = vpop.f32.mrb[0].mxu0
    %v2291 = vadd.f32 %v2250, %v2290
    %v2292 = vpop.f32.mrb[0].mxu0
    %v2293 = vadd.f32 %v2252, %v2292
    %v2294 = vpop.f32.mrb[0].mxu0
    %v2295 = vpop.f32.mrb[0].mxu0
    %2296 = vdwg.mxu0
    %v2297 = vmax.f32 %v1255, 0.0
    %v2298 = vmax.f32 %v1257, 0.0
    %v2299 = vmax.f32 %v1337, 0.0
    %v2300 = vmax.f32 %v1339, 0.0
    %v2301 = vmax.f32 %v2209, 0.0
    %v2302 = vmax.f32 %v2211, 0.0
    %v2303 = vmax.f32 %v2291, 0.0
    %v2304 = vmax.f32 %v2293, 0.0
    %v2305 = vpack.c.bf16 %v2297, %v2297
    %v2306 = vpack.c.bf16 %v2298, %v2298
    %v2307 = vpack.c.bf16 %v2299, %v2299
    %v2308 = vpack.c.bf16 %v2300, %v2300
    %v2309 = vld [vmem:[%s7] sm:$0xf]
    %v2310 = vld [vmem:[%s7 + $0x4] sm:$0xf]
    %v2311 = vld [vmem:[%s7 + $0x8] sm:$0xf]
    %v2312 = vld [vmem:[%s7 + $0xc] sm:$0xf]
    %v2313 = vld [vmem:[%s7 + $0x10] sm:$0xf]
    %v2314 = vld [vmem:[%s7 + $0x14] sm:$0xf]
    %v2315 = vld [vmem:[%s7 + $0x18] sm:$0xf]
    %v2316 = vld [vmem:[%s7 + $0x1c] sm:$0xf]
    %v2317 = vld [vmem:[%s7 + $0x20] sm:$0xf]
    %v2318 = vld [vmem:[%s7 + $0x24] sm:$0xf]
    %v2319 = vld [vmem:[%s7 + $0x28] sm:$0xf]
    %v2320 = vld [vmem:[%s7 + $0x2c] sm:$0xf]
    %v2321 = vld [vmem:[%s7 + $0x30] sm:$0xf]
    %v2322 = vld [vmem:[%s7 + $0x34] sm:$0xf]
    %v2323 = vld [vmem:[%s7 + $0x38] sm:$0xf]
    %v2324 = vld [vmem:[%s7 + $0x3c] sm:$0xf]
    %v2325 = vld [vmem:[%s7 + $0x40] sm:$0xf]
    %v2326 = vld [vmem:[%s7 + $0x44] sm:$0xf]
    %v2327 = vld [vmem:[%s7 + $0x48] sm:$0xf]
    %v2328 = vld [vmem:[%s7 + $0x4c] sm:$0xf]
    %v2329 = vld [vmem:[%s7 + $0x50] sm:$0xf]
    %v2330 = vld [vmem:[%s7 + $0x54] sm:$0xf]
    %v2331 = vld [vmem:[%s7 + $0x58] sm:$0xf]
    %v2332 = vld [vmem:[%s7 + $0x5c] sm:$0xf]
    %v2333 = vld [vmem:[%s7 + $0x60] sm:$0xf]
    %v2334 = vld [vmem:[%s7 + $0x64] sm:$0xf]
    %v2335 = vld [vmem:[%s7 + $0x68] sm:$0xf]
    %v2336 = vld [vmem:[%s7 + $0x6c] sm:$0xf]
    %v2337 = vld [vmem:[%s7 + $0x70] sm:$0xf]
    %v2338 = vld [vmem:[%s7 + $0x74] sm:$0xf]
    %v2339 = vld [vmem:[%s7 + $0x78] sm:$0xf]
    %v2340 = vld [vmem:[%s7 + $0x7c] sm:$0xf]
    %v2341 = vld [vmem:[%s7 + $0x80] sm:$0xf]
    %v2342 = vld [vmem:[%s7 + $0x84] sm:$0xf]
    %v2343 = vld [vmem:[%s7 + $0x88] sm:$0xf]
    %v2344 = vld [vmem:[%s7 + $0x8c] sm:$0xf]
    %v2345 = vld [vmem:[%s7 + $0x90] sm:$0xf]
    %v2346 = vld [vmem:[%s7 + $0x94] sm:$0xf]
    %v2347 = vld [vmem:[%s7 + $0x98] sm:$0xf]
    %v2348 = vld [vmem:[%s7 + $0x9c] sm:$0xf]
    %v2349 = vld [vmem:[%s7 + $0xa0] sm:$0xf]
    %v2350 = vld [vmem:[%s7 + $0xa4] sm:$0xf]
    %v2351 = vld [vmem:[%s7 + $0xa8] sm:$0xf]
    %v2352 = vld [vmem:[%s7 + $0xac] sm:$0xf]
    %v2353 = vld [vmem:[%s7 + $0xb0] sm:$0xf]
    %v2354 = vld [vmem:[%s7 + $0xb4] sm:$0xf]
    %v2355 = vld [vmem:[%s7 + $0xb8] sm:$0xf]
    %v2356 = vld [vmem:[%s7 + $0xbc] sm:$0xf]
    %v2357 = vld [vmem:[%s7 + $0xc0] sm:$0xf]
    %v2358 = vld [vmem:[%s7 + $0xc4] sm:$0xf]
    %v2359 = vld [vmem:[%s7 + $0xc8] sm:$0xf]
    %v2360 = vld [vmem:[%s7 + $0xcc] sm:$0xf]
    %v2361 = vld [vmem:[%s7 + $0xd0] sm:$0xf]
    %v2362 = vld [vmem:[%s7 + $0xd4] sm:$0xf]
    %v2363 = vld [vmem:[%s7 + $0xd8] sm:$0xf]
    %v2364 = vld [vmem:[%s7 + $0xdc] sm:$0xf]
    %v2365 = vld [vmem:[%s7 + $0xe0] sm:$0xf]
    %v2366 = vld [vmem:[%s7 + $0xe4] sm:$0xf]
    %v2367 = vld [vmem:[%s7 + $0xe8] sm:$0xf]
    %v2368 = vld [vmem:[%s7 + $0xec] sm:$0xf]
    %v2369 = vld [vmem:[%s7 + $0xf0] sm:$0xf]
    %v2370 = vld [vmem:[%s7 + $0xf4] sm:$0xf]
    %v2371 = vld [vmem:[%s7 + $0xf8] sm:$0xf]
    %v2372 = vld [vmem:[%s7 + $0xfc] sm:$0xf]
    %v2373 = vpack.c.bf16 %v2301, %v2301
    %v2374 = vpack.c.bf16 %v2302, %v2302
    %v2375 = vpack.c.bf16 %v2303, %v2303
    %v2376 = vpack.c.bf16 %v2304, %v2304
    %v2377 = vld [vmem:[%s8] sm:$0xf]
    %v2378 = vld [vmem:[%s8 + $0x4] sm:$0xf]
    %v2379 = vld [vmem:[%s8 + $0x8] sm:$0xf]
    %v2380 = vld [vmem:[%s8 + $0xc] sm:$0xf]
    %v2381 = vld [vmem:[%s8 + $0x10] sm:$0xf]
    %v2382 = vld [vmem:[%s8 + $0x14] sm:$0xf]
    %v2383 = vld [vmem:[%s8 + $0x18] sm:$0xf]
    %v2384 = vld [vmem:[%s8 + $0x1c] sm:$0xf]
    %v2385 = vld [vmem:[%s8 + $0x20] sm:$0xf]
    %v2386 = vld [vmem:[%s8 + $0x24] sm:$0xf]
    %v2387 = vld [vmem:[%s8 + $0x28] sm:$0xf]
    %v2388 = vld [vmem:[%s8 + $0x2c] sm:$0xf]
    %v2389 = vld [vmem:[%s8 + $0x30] sm:$0xf]
    %v2390 = vld [vmem:[%s8 + $0x34] sm:$0xf]
    %v2391 = vld [vmem:[%s8 + $0x38] sm:$0xf]
    %v2392 = vld [vmem:[%s8 + $0x3c] sm:$0xf]
    %v2393 = vld [vmem:[%s8 + $0x40] sm:$0xf]
    %v2394 = vld [vmem:[%s8 + $0x44] sm:$0xf]
    %v2395 = vld [vmem:[%s8 + $0x48] sm:$0xf]
    %v2396 = vld [vmem:[%s8 + $0x4c] sm:$0xf]
    %v2397 = vld [vmem:[%s8 + $0x50] sm:$0xf]
    %v2398 = vld [vmem:[%s8 + $0x54] sm:$0xf]
    %v2399 = vld [vmem:[%s8 + $0x58] sm:$0xf]
    %v2400 = vld [vmem:[%s8 + $0x5c] sm:$0xf]
    %v2401 = vld [vmem:[%s8 + $0x60] sm:$0xf]
    %v2402 = vld [vmem:[%s8 + $0x64] sm:$0xf]
    %v2403 = vld [vmem:[%s8 + $0x68] sm:$0xf]
    %v2404 = vld [vmem:[%s8 + $0x6c] sm:$0xf]
    %v2405 = vld [vmem:[%s8 + $0x70] sm:$0xf]
    %v2406 = vld [vmem:[%s8 + $0x74] sm:$0xf]
    %v2407 = vld [vmem:[%s8 + $0x78] sm:$0xf]
    %v2408 = vld [vmem:[%s8 + $0x7c] sm:$0xf]
    %v2409 = vld [vmem:[%s8 + $0x80] sm:$0xf]
    %v2410 = vld [vmem:[%s8 + $0x84] sm:$0xf]
    %v2411 = vld [vmem:[%s8 + $0x88] sm:$0xf]
    %v2412 = vld [vmem:[%s8 + $0x8c] sm:$0xf]
    %v2413 = vld [vmem:[%s8 + $0x90] sm:$0xf]
    %v2414 = vld [vmem:[%s8 + $0x94] sm:$0xf]
    %v2415 = vld [vmem:[%s8 + $0x98] sm:$0xf]
    %v2416 = vld [vmem:[%s8 + $0x9c] sm:$0xf]
    %v2417 = vld [vmem:[%s8 + $0xa0] sm:$0xf]
    %v2418 = vld [vmem:[%s8 + $0xa4] sm:$0xf]
    %v2419 = vld [vmem:[%s8 + $0xa8] sm:$0xf]
    %v2420 = vld [vmem:[%s8 + $0xac] sm:$0xf]
    %v2421 = vld [vmem:[%s8 + $0xb0] sm:$0xf]
    %v2422 = vld [vmem:[%s8 + $0xb4] sm:$0xf]
    %v2423 = vld [vmem:[%s8 + $0xb8] sm:$0xf]
    %v2424 = vld [vmem:[%s8 + $0xbc] sm:$0xf]
    %v2425 = vld [vmem:[%s8 + $0xc0] sm:$0xf]
    %v2426 = vld [vmem:[%s8 + $0xc4] sm:$0xf]
    %v2427 = vld [vmem:[%s8 + $0xc8] sm:$0xf]
    %v2428 = vld [vmem:[%s8 + $0xcc] sm:$0xf]
    %v2429 = vld [vmem:[%s8 + $0xd0] sm:$0xf]
    %v2430 = vld [vmem:[%s8 + $0xd4] sm:$0xf]
    %v2431 = vld [vmem:[%s8 + $0xd8] sm:$0xf]
    %v2432 = vld [vmem:[%s8 + $0xdc] sm:$0xf]
    %v2433 = vld [vmem:[%s8 + $0xe0] sm:$0xf]
    %v2434 = vld [vmem:[%s8 + $0xe4] sm:$0xf]
    %v2435 = vld [vmem:[%s8 + $0xe8] sm:$0xf]
    %v2436 = vld [vmem:[%s8 + $0xec] sm:$0xf]
    %v2437 = vld [vmem:[%s8 + $0xf0] sm:$0xf]
    %v2438 = vld [vmem:[%s8 + $0xf4] sm:$0xf]
    %v2439 = vld [vmem:[%s8 + $0xf8] sm:$0xf]
    %v2440 = vld [vmem:[%s8 + $0xfc] sm:$0xf]
    %v2505 = vunpack.c.l.b16 %v2377
    %v2506 = vunpack.c.l.b16 %v2378
    %v2507 = vunpack.c.l.b16 %v2379
    %v2508 = vunpack.c.l.b16 %v2380
    %v2509 = vunpack.c.l.b16 %v2381
    %v2510 = vunpack.c.l.b16 %v2382
    %v2511 = vunpack.c.l.b16 %v2383
    %v2512 = vunpack.c.l.b16 %v2384
    %v2513 = vunpack.c.l.b16 %v2385
    %v2514 = vunpack.c.l.b16 %v2386
    %v2515 = vunpack.c.l.b16 %v2387
    %v2516 = vunpack.c.l.b16 %v2388
    %v2517 = vunpack.c.l.b16 %v2389
    %v2518 = vunpack.c.l.b16 %v2390
    %v2519 = vunpack.c.l.b16 %v2391
    %v2520 = vunpack.c.l.b16 %v2392
    %v2521 = vunpack.c.l.b16 %v2393
    %v2522 = vunpack.c.l.b16 %v2394
    %v2523 = vunpack.c.l.b16 %v2395
    %v2524 = vunpack.c.l.b16 %v2396
    %v2525 = vunpack.c.l.b16 %v2397
    %v2526 = vunpack.c.l.b16 %v2398
    %v2527 = vunpack.c.l.b16 %v2399
    %v2528 = vunpack.c.l.b16 %v2400
    %v2529 = vunpack.c.l.b16 %v2401
    %v2530 = vunpack.c.l.b16 %v2402
    %v2531 = vunpack.c.l.b16 %v2403
    %v2532 = vunpack.c.l.b16 %v2404
    %v2533 = vunpack.c.l.b16 %v2405
    %v2534 = vunpack.c.l.b16 %v2406
    %v2535 = vunpack.c.l.b16 %v2407
    %v2536 = vunpack.c.l.b16 %v2408
    %v2537 = vunpack.c.l.b16 %v2409
    %v2538 = vunpack.c.l.b16 %v2410
    %v2539 = vunpack.c.l.b16 %v2411
    %v2540 = vunpack.c.l.b16 %v2412
    %v2541 = vunpack.c.l.b16 %v2413
    %v2542 = vunpack.c.l.b16 %v2414
    %v2543 = vunpack.c.l.b16 %v2415
    %v2544 = vunpack.c.l.b16 %v2416
    %v2545 = vunpack.c.l.b16 %v2417
    %v2546 = vunpack.c.l.b16 %v2418
    %v2547 = vunpack.c.l.b16 %v2419
    %v2548 = vunpack.c.l.b16 %v2420
    %v2549 = vunpack.c.l.b16 %v2421
    %v2550 = vunpack.c.l.b16 %v2422
    %v2551 = vunpack.c.l.b16 %v2423
    %v2552 = vunpack.c.l.b16 %v2424
    %v2553 = vunpack.c.l.b16 %v2425
    %v2554 = vunpack.c.l.b16 %v2426
    %v2555 = vunpack.c.l.b16 %v2427
    %v2556 = vunpack.c.l.b16 %v2428
    %v2557 = vunpack.c.l.b16 %v2429
    %v2558 = vunpack.c.l.b16 %v2430
    %v2559 = vunpack.c.l.b16 %v2431
    %v2560 = vunpack.c.l.b16 %v2432
    %v2561 = vunpack.c.l.b16 %v2433
    %v2562 = vunpack.c.l.b16 %v2434
    %v2563 = vunpack.c.l.b16 %v2435
    %v2564 = vunpack.c.l.b16 %v2436
    %v2565 = vunpack.c.l.b16 %v2437
    %v2566 = vunpack.c.l.b16 %v2438
    %v2567 = vunpack.c.l.b16 %v2439
    %v2568 = vunpack.c.l.b16 %v2440
    %v2569 = vpack.c.b16 %v2506, %v2505
    %v2570 = vpack.c.b16 %v2508, %v2507
    %v2571 = vpack.c.b16 %v2510, %v2509
    %v2572 = vpack.c.b16 %v2512, %v2511
    %v2573 = vpack.c.b16 %v2514, %v2513
    %v2574 = vpack.c.b16 %v2516, %v2515
    %v2575 = vpack.c.b16 %v2518, %v2517
    %v2576 = vpack.c.b16 %v2520, %v2519
    %v2577 = vpack.c.b16 %v2522, %v2521
    %v2578 = vpack.c.b16 %v2524, %v2523
    %v2579 = vpack.c.b16 %v2526, %v2525
    %v2580 = vpack.c.b16 %v2528, %v2527
    %v2581 = vpack.c.b16 %v2530, %v2529
    %v2582 = vpack.c.b16 %v2532, %v2531
    %v2583 = vpack.c.b16 %v2534, %v2533
    %v2584 = vpack.c.b16 %v2536, %v2535
    %v2585 = vpack.c.b16 %v2538, %v2537
    %v2586 = vpack.c.b16 %v2540, %v2539
    %v2587 = vpack.c.b16 %v2542, %v2541
    %v2588 = vpack.c.b16 %v2544, %v2543
    %v2589 = vpack.c.b16 %v2546, %v2545
    %v2590 = vpack.c.b16 %v2548, %v2547
    %v2591 = vpack.c.b16 %v2550, %v2549
    %v2592 = vpack.c.b16 %v2552, %v2551
    %v2593 = vpack.c.b16 %v2554, %v2553
    %v2594 = vpack.c.b16 %v2556, %v2555
    %v2595 = vpack.c.b16 %v2558, %v2557
    %v2596 = vpack.c.b16 %v2560, %v2559
    %v2597 = vpack.c.b16 %v2562, %v2561
    %v2598 = vpack.c.b16 %v2564, %v2563
    %v2599 = vpack.c.b16 %v2566, %v2565
    %v2600 = vpack.c.b16 %v2568, %v2567
    %2633 = vmatprep.subr.bf16.mxu0 0
    %2634 = vmatpush1.bf16.msra.mxu0 %v2569
    %2635 = vmatprep.subr.bf16.mxu0 0
    %2636 = vmatpush1.bf16.msra.mxu0 %v2570
    %2637 = vmatprep.subr.bf16.mxu0 0
    %2638 = vmatpush1.bf16.msra.mxu0 %v2571
    %2639 = vmatprep.subr.bf16.mxu0 0
    %2640 = vmatpush1.bf16.msra.mxu0 %v2572
    %2641 = vmatprep.subr.bf16.mxu0 0
    %2642 = vmatpush1.bf16.msra.mxu0 %v2573
    %2643 = vmatprep.subr.bf16.mxu0 0
    %2644 = vmatpush1.bf16.msra.mxu0 %v2574
    %2645 = vmatprep.subr.bf16.mxu0 0
    %2646 = vmatpush1.bf16.msra.mxu0 %v2575
    %2647 = vmatprep.subr.bf16.mxu0 0
    %2648 = vmatpush1.bf16.msra.mxu0 %v2576
    %2649 = vmatprep.subr.bf16.mxu0 0
    %2650 = vmatpush1.bf16.msra.mxu0 %v2577
    %2651 = vmatprep.subr.bf16.mxu0 0
    %2652 = vmatpush1.bf16.msra.mxu0 %v2578
    %2653 = vmatprep.subr.bf16.mxu0 0
    %2654 = vmatpush1.bf16.msra.mxu0 %v2579
    %2655 = vmatprep.subr.bf16.mxu0 0
    %2656 = vmatpush1.bf16.msra.mxu0 %v2580
    %2657 = vmatprep.subr.bf16.mxu0 0
    %2658 = vmatpush1.bf16.msra.mxu0 %v2581
    %2659 = vmatprep.subr.bf16.mxu0 0
    %2660 = vmatpush1.bf16.msra.mxu0 %v2582
    %2661 = vmatprep.subr.bf16.mxu0 0
    %2662 = vmatpush1.bf16.msra.mxu0 %v2583
    %2663 = vmatprep.subr.bf16.mxu0 0
    %2664 = vmatpush1.bf16.msra.mxu0 %v2584
    %2665 = vmatprep.mubr.bf16.mxu0 %v2374
    %2666 = vmatmul.mubr.bf16.gmra.mrb[0].mxu0 %v2373
    %v2667 = vpop.f32.mrb[0].mxu0
    %v2668 = vadd.f32 0.0, %v2667
    %v2669 = vpop.f32.mrb[0].mxu0
    %v2670 = vpop.f32.mrb[0].mxu0
    %v2671 = vpop.f32.mrb[0].mxu0
    %2672 = vdwg.mxu0
    %2673 = vmatprep.subr.bf16.mxu0 0
    %2674 = vmatpush1.bf16.msra.mxu0 %v2585
    %2675 = vmatprep.subr.bf16.mxu0 0
    %2676 = vmatpush1.bf16.msra.mxu0 %v2586
    %2677 = vmatprep.subr.bf16.mxu0 0
    %2678 = vmatpush1.bf16.msra.mxu0 %v2587
    %2679 = vmatprep.subr.bf16.mxu0 0
    %2680 = vmatpush1.bf16.msra.mxu0 %v2588
    %2681 = vmatprep.subr.bf16.mxu0 0
    %2682 = vmatpush1.bf16.msra.mxu0 %v2589
    %2683 = vmatprep.subr.bf16.mxu0 0
    %2684 = vmatpush1.bf16.msra.mxu0 %v2590
    %2685 = vmatprep.subr.bf16.mxu0 0
    %2686 = vmatpush1.bf16.msra.mxu0 %v2591
    %2687 = vmatprep.subr.bf16.mxu0 0
    %2688 = vmatpush1.bf16.msra.mxu0 %v2592
    %2689 = vmatprep.subr.bf16.mxu0 0
    %2690 = vmatpush1.bf16.msra.mxu0 %v2593
    %2691 = vmatprep.subr.bf16.mxu0 0
    %2692 = vmatpush1.bf16.msra.mxu0 %v2594
    %2693 = vmatprep.subr.bf16.mxu0 0
    %2694 = vmatpush1.bf16.msra.mxu0 %v2595
    %2695 = vmatprep.subr.bf16.mxu0 0
    %2696 = vmatpush1.bf16.msra.mxu0 %v2596
    %2697 = vmatprep.subr.bf16.mxu0 0
    %2698 = vmatpush1.bf16.msra.mxu0 %v2597
    %2699 = vmatprep.subr.bf16.mxu0 0
    %2700 = vmatpush1.bf16.msra.mxu0 %v2598
    %2701 = vmatprep.subr.bf16.mxu0 0
    %2702 = vmatpush1.bf16.msra.mxu0 %v2599
    %2703 = vmatprep.subr.bf16.mxu0 0
    %2704 = vmatpush1.bf16.msra.mxu0 %v2600
    %2705 = vmatprep.mubr.bf16.mxu0 %v2376
    %2706 = vmatmul.mubr.bf16.gmra.mrb[0].mxu0 %v2375
    %v2707 = vpop.f32.mrb[0].mxu0
    %v2708 = vadd.f32 %v2668, %v2707
    %v2709 = vpop.f32.mrb[0].mxu0
    %v2710 = vpop.f32.mrb[0].mxu0
    %v2711 = vpop.f32.mrb[0].mxu0
    %2712 = vdwg.mxu0
    %v2777 = vunpack.c.l.b16 %v2309
    %v2778 = vunpack.c.l.b16 %v2310
    %v2779 = vunpack.c.l.b16 %v2311
    %v2780 = vunpack.c.l.b16 %v2312
    %v2781 = vunpack.c.l.b16 %v2313
    %v2782 = vunpack.c.l.b16 %v2314
    %v2783 = vunpack.c.l.b16 %v2315
    %v2784 = vunpack.c.l.b16 %v2316
    %v2785 = vunpack.c.l.b16 %v2317
    %v2786 = vunpack.c.l.b16 %v2318
    %v2787 = vunpack.c.l.b16 %v2319
    %v2788 = vunpack.c.l.b16 %v2320
    %v2789 = vunpack.c.l.b16 %v2321
    %v2790 = vunpack.c.l.b16 %v2322
    %v2791 = vunpack.c.l.b16 %v2323
    %v2792 = vunpack.c.l.b16 %v2324
    %v2793 = vunpack.c.l.b16 %v2325
    %v2794 = vunpack.c.l.b16 %v2326
    %v2795 = vunpack.c.l.b16 %v2327
    %v2796 = vunpack.c.l.b16 %v2328
    %v2797 = vunpack.c.l.b16 %v2329
    %v2798 = vunpack.c.l.b16 %v2330
    %v2799 = vunpack.c.l.b16 %v2331
    %v2800 = vunpack.c.l.b16 %v2332
    %v2801 = vunpack.c.l.b16 %v2333
    %v2802 = vunpack.c.l.b16 %v2334
    %v2803 = vunpack.c.l.b16 %v2335
    %v2804 = vunpack.c.l.b16 %v2336
    %v2805 = vunpack.c.l.b16 %v2337
    %v2806 = vunpack.c.l.b16 %v2338
    %v2807 = vunpack.c.l.b16 %v2339
    %v2808 = vunpack.c.l.b16 %v2340
    %v2809 = vunpack.c.l.b16 %v2341
    %v2810 = vunpack.c.l.b16 %v2342
    %v2811 = vunpack.c.l.b16 %v2343
    %v2812 = vunpack.c.l.b16 %v2344
    %v2813 = vunpack.c.l.b16 %v2345
    %v2814 = vunpack.c.l.b16 %v2346
    %v2815 = vunpack.c.l.b16 %v2347
    %v2816 = vunpack.c.l.b16 %v2348
    %v2817 = vunpack.c.l.b16 %v2349
    %v2818 = vunpack.c.l.b16 %v2350
    %v2819 = vunpack.c.l.b16 %v2351
    %v2820 = vunpack.c.l.b16 %v2352
    %v2821 = vunpack.c.l.b16 %v2353
    %v2822 = vunpack.c.l.b16 %v2354
    %v2823 = vunpack.c.l.b16 %v2355
    %v2824 = vunpack.c.l.b16 %v2356
    %v2825 = vunpack.c.l.b16 %v2357
    %v2826 = vunpack.c.l.b16 %v2358
    %v2827 = vunpack.c.l.b16 %v2359
    %v2828 = vunpack.c.l.b16 %v2360
    %v2829 = vunpack.c.l.b16 %v2361
    %v2830 = vunpack.c.l.b16 %v2362
    %v2831 = vunpack.c.l.b16 %v2363
    %v2832 = vunpack.c.l.b16 %v2364
    %v2833 = vunpack.c.l.b16 %v2365
    %v2834 = vunpack.c.l.b16 %v2366
    %v2835 = vunpack.c.l.b16 %v2367
    %v2836 = vunpack.c.l.b16 %v2368
    %v2837 = vunpack.c.l.b16 %v2369
    %v2838 = vunpack.c.l.b16 %v2370
    %v2839 = vunpack.c.l.b16 %v2371
    %v2840 = vunpack.c.l.b16 %v2372
    %v2841 = vpack.c.b16 %v2778, %v2777
    %v2842 = vpack.c.b16 %v2780, %v2779
    %v2843 = vpack.c.b16 %v2782, %v2781
    %v2844 = vpack.c.b16 %v2784, %v2783
    %v2845 = vpack.c.b16 %v2786, %v2785
    %v2846 = vpack.c.b16 %v2788, %v2787
    %v2847 = vpack.c.b16 %v2790, %v2789
    %v2848 = vpack.c.b16 %v2792, %v2791
    %v2849 = vpack.c.b16 %v2794, %v2793
    %v2850 = vpack.c.b16 %v2796, %v2795
    %v2851 = vpack.c.b16 %v2798, %v2797
    %v2852 = vpack.c.b16 %v2800, %v2799
    %v2853 = vpack.c.b16 %v2802, %v2801
    %v2854 = vpack.c.b16 %v2804, %v2803
    %v2855 = vpack.c.b16 %v2806, %v2805
    %v2856 = vpack.c.b16 %v2808, %v2807
    %v2857 = vpack.c.b16 %v2810, %v2809
    %v2858 = vpack.c.b16 %v2812, %v2811
    %v2859 = vpack.c.b16 %v2814, %v2813
    %v2860 = vpack.c.b16 %v2816, %v2815
    %v2861 = vpack.c.b16 %v2818, %v2817
    %v2862 = vpack.c.b16 %v2820, %v2819
    %v2863 = vpack.c.b16 %v2822, %v2821
    %v2864 = vpack.c.b16 %v2824, %v2823
    %v2865 = vpack.c.b16 %v2826, %v2825
    %v2866 = vpack.c.b16 %v2828, %v2827
    %v2867 = vpack.c.b16 %v2830, %v2829
    %v2868 = vpack.c.b16 %v2832, %v2831
    %v2869 = vpack.c.b16 %v2834, %v2833
    %v2870 = vpack.c.b16 %v2836, %v2835
    %v2871 = vpack.c.b16 %v2838, %v2837
    %v2872 = vpack.c.b16 %v2840, %v2839
    %2905 = vmatprep.subr.bf16.mxu0 0
    %2906 = vmatpush1.bf16.msra.mxu0 %v2841
    %2907 = vmatprep.subr.bf16.mxu0 0
    %2908 = vmatpush1.bf16.msra.mxu0 %v2842
    %2909 = vmatprep.subr.bf16.mxu0 0
    %2910 = vmatpush1.bf16.msra.mxu0 %v2843
    %2911 = vmatprep.subr.bf16.mxu0 0
    %2912 = vmatpush1.bf16.msra.mxu0 %v2844
    %2913 = vmatprep.subr.bf16.mxu0 0
    %2914 = vmatpush1.bf16.msra.mxu0 %v2845
    %2915 = vmatprep.subr.bf16.mxu0 0
    %2916 = vmatpush1.bf16.msra.mxu0 %v2846
    %2917 = vmatprep.subr.bf16.mxu0 0
    %2918 = vmatpush1.bf16.msra.mxu0 %v2847
    %2919 = vmatprep.subr.bf16.mxu0 0
    %2920 = vmatpush1.bf16.msra.mxu0 %v2848
    %2921 = vmatprep.subr.bf16.mxu0 0
    %2922 = vmatpush1.bf16.msra.mxu0 %v2849
    %2923 = vmatprep.subr.bf16.mxu0 0
    %2924 = vmatpush1.bf16.msra.mxu0 %v2850
    %2925 = vmatprep.subr.bf16.mxu0 0
    %2926 = vmatpush1.bf16.msra.mxu0 %v2851
    %2927 = vmatprep.subr.bf16.mxu0 0
    %2928 = vmatpush1.bf16.msra.mxu0 %v2852
    %2929 = vmatprep.subr.bf16.mxu0 0
    %2930 = vmatpush1.bf16.msra.mxu0 %v2853
    %2931 = vmatprep.subr.bf16.mxu0 0
    %2932 = vmatpush1.bf16.msra.mxu0 %v2854
    %2933 = vmatprep.subr.bf16.mxu0 0
    %2934 = vmatpush1.bf16.msra.mxu0 %v2855
    %2935 = vmatprep.subr.bf16.mxu0 0
    %2936 = vmatpush1.bf16.msra.mxu0 %v2856
    %2937 = vmatprep.mubr.bf16.mxu0 %v2306
    %2938 = vmatmul.mubr.bf16.gmra.mrb[0].mxu0 %v2305
    %v2939 = vpop.f32.mrb[0].mxu0
    %v2940 = vadd.f32 %v2708, %v2939
    %v2941 = vpop.f32.mrb[0].mxu0
    %v2942 = vpop.f32.mrb[0].mxu0
    %v2943 = vpop.f32.mrb[0].mxu0
    %2944 = vdwg.mxu0
    %2945 = vmatprep.subr.bf16.mxu0 0
    %2946 = vmatpush1.bf16.msra.mxu0 %v2857
    %2947 = vmatprep.subr.bf16.mxu0 0
    %2948 = vmatpush1.bf16.msra.mxu0 %v2858
    %2949 = vmatprep.subr.bf16.mxu0 0
    %2950 = vmatpush1.bf16.msra.mxu0 %v2859
    %2951 = vmatprep.subr.bf16.mxu0 0
    %2952 = vmatpush1.bf16.msra.mxu0 %v2860
    %2953 = vmatprep.subr.bf16.mxu0 0
    %2954 = vmatpush1.bf16.msra.mxu0 %v2861
    %2955 = vmatprep.subr.bf16.mxu0 0
    %2956 = vmatpush1.bf16.msra.mxu0 %v2862
    %2957 = vmatprep.subr.bf16.mxu0 0
    %2958 = vmatpush1.bf16.msra.mxu0 %v2863
    %2959 = vmatprep.subr.bf16.mxu0 0
    %2960 = vmatpush1.bf16.msra.mxu0 %v2864
    %2961 = vmatprep.subr.bf16.mxu0 0
    %2962 = vmatpush1.bf16.msra.mxu0 %v2865
    %2963 = vmatprep.subr.bf16.mxu0 0
    %2964 = vmatpush1.bf16.msra.mxu0 %v2866
    %2965 = vmatprep.subr.bf16.mxu0 0
    %2966 = vmatpush1.bf16.msra.mxu0 %v2867
    %2967 = vmatprep.subr.bf16.mxu0 0
    %2968 = vmatpush1.bf16.msra.mxu0 %v2868
    %2969 = vmatprep.subr.bf16.mxu0 0
    %2970 = vmatpush1.bf16.msra.mxu0 %v2869
    %2971 = vmatprep.subr.bf16.mxu0 0
    %2972 = vmatpush1.bf16.msra.mxu0 %v2870
    %2973 = vmatprep.subr.bf16.mxu0 0
    %2974 = vmatpush1.bf16.msra.mxu0 %v2871
    %2975 = vmatprep.subr.bf16.mxu0 0
    %2976 = vmatpush1.bf16.msra.mxu0 %v2872
    %2977 = vmatprep.mubr.bf16.mxu0 %v2308
    %2978 = vmatmul.mubr.bf16.gmra.mrb[0].mxu0 %v2307
    %v2979 = vpop.f32.mrb[0].mxu0
    %v2980 = vadd.f32 %v2940, %v2979
    %v2981 = vpop.f32.mrb[0].mxu0
    %v2982 = vpop.f32.mrb[0].mxu0
    %v2983 = vpop.f32.mrb[0].mxu0
    %2984 = vdwg.mxu0
    %v2985 = vld [vmem:[%s9] sm:$0x1]
    %v2987 = vlaneseq
    %v2988 = vshrl.u32 %v2987, 7
    %v2989 = vsub.s32 0, %v2988
    %v2990 = vrot.slane %v2985, %v2989
    %v2992 = vadd.f32 %v2980, %v2990
    %v2993 = vlaneseq
    %v2994 = vand.u32 %v2993, 127
    %vm2995 = vcmp.lt.s32.totalorder %v2994, 3
    %v2996 = vsel %vm2995, %v2992, 0.0
    %vm2997 = vcmask 58368
    %v2998 = vsel %vm2997, %v2996, 0.0
    %2999 = vadd.xlane.f32.xlu0 %v2998
    %v3000 = vpop.xlane.xlu0 %2999
    %v3001 = vmul.f32 %v3000, 0.33333334
    %vm3002 = vcmp.eq.s32.totalorder %v2994, 3
    %v3003 = vsel %vm3002, %v2992, 0.0
    %v3004 = vsel %vm2997, %v3003, 0.0
    %3005 = vadd.xlane.f32.xlu0 %v3004
    %v3006 = vpop.xlane.xlu0 %3005
    %v3007 = vsub.f32 %v2992, %v3001
    %v3008 = vadd.f32 %v3006, %v3007
    %v3009 = vsel %vm2995, %v3008, 0.0
    %3010 = vst.msk [vmem:[#allocation7] sm:$0x3] %vm2997, %v3009
    // Predicated region
    $region50: #{simple_ff_dqn_forward.1} parent=1 // pred_check
      _
    $region51: #{simple_ff_dqn_forward.1} parent=1 // pred_check_branch
      %3012 = sbr.rel (0) target = $region53
    $region52: #{simple_ff_dqn_forward.1} parent=1 // pred_region
      %s3014 = ssub.s32 32, 32
      %3015 = vsyncadd [#allocation4], %s3014
      %s3017 = sshll.u32 [#allocation7], 4
      %s3018 = int_to_ptr.vmem [resolvable:$true] %s3017
      %3020 = dma.vmem_to_hbm [thread:$0]  %s3018, 32, %s10, [#allocation4]
    $region53: #{simple_ff_dqn_forward.1} parent=1 // pred_fallthru
      _
    // Predicated region
    $region54: #{simple_ff_dqn_forward.1} parent=1 // pred_check
      _
    $region55: #{simple_ff_dqn_forward.1} parent=1 // pred_check_branch
      %3022 = sbr.rel (0) target = $region57
    $region56: #{simple_ff_dqn_forward.1} parent=1 // pred_region
      %3023 = dma.done [#allocation4], 32
    $region57: #{simple_ff_dqn_forward.1} parent=1 // pred_fallthru
      _
    %3024 = vsyncpa [#allocation3], 1
    %3025 = vsyncpa [#allocation6], 1
    %3026 = vsyncpa [#allocation4], 1

</llo_original>
